<compile_context>
chip_gen: v5e
topology: v5e:2x2
jax: 0.10.0
libtpu: 0.0.40
codegen_flags: <defaults>
</compile_context>

<pallas_src>
import jax
import jax.numpy as jnp
from jax.experimental import pallas as pl
from jax.experimental.pallas import tpu as pltpu

H1, H2, H3 = 128, 256, 512  # hidden widths fixed by the PyTorch module


def _round_up(n, m):
    return ((n + m - 1) // m) * m


def _leaky_relu(v, slope=0.2):
    # For 0 < slope < 1, max(v, slope*v) == LeakyReLU(v): 2 VALU ops, no select.
    return jnp.maximum(v, slope * v)


def generator_kernel(x_ref, w1_ref, b1_ref, w2_ref, b2_ref,
                     w3_ref, b3_ref, w4_ref, b4_ref, o_ref):
    # bf16 operands on the MXU with f32 accumulation; bias add / activation /
    # tanh in f32 (v5e VPU/EUP have no bf16).  The bf16 downcast is fused into
    # each activation so any spilled intermediate is bf16.
    h = jnp.dot(x_ref[...], w1_ref[...], preferred_element_type=jnp.float32)
    h = _leaky_relu(h + b1_ref[...]).astype(jnp.bfloat16)

    h = jnp.dot(h, w2_ref[...], preferred_element_type=jnp.float32)
    h = _leaky_relu(h + b2_ref[...]).astype(jnp.bfloat16)

    h = jnp.dot(h, w3_ref[...], preferred_element_type=jnp.float32)
    h = _leaky_relu(h + b3_ref[...]).astype(jnp.bfloat16)

    h = jnp.dot(h, w4_ref[...], preferred_element_type=jnp.float32)
    o_ref[...] = jnp.tanh(h + b4_ref[...]).astype(o_ref.dtype)


def prepare_params(params):
    """Pad + cast weights once (NOT per forward call).

    Zero-pads the first layer's input dim and the last layer's output dim to
    multiples of 128 (lane-dense) and casts matmul operands to bf16.
    Returns (prepared_tensors, out_dim)."""
    w1, b1, w2, b2, w3, b3, w4, b4 = params
    in_dim = w1.shape[0]
    out_dim = w4.shape[1]
    in_pad = _round_up(in_dim, 128)
    out_pad = _round_up(out_dim, 128)

    w1p = jnp.pad(w1, ((0, in_pad - in_dim), (0, 0))).astype(jnp.bfloat16)
    w4p = jnp.pad(w4, ((0, 0), (0, out_pad - out_dim))).astype(jnp.bfloat16)
    b4p = jnp.pad(b4, ((0, 0), (0, out_pad - out_dim))).astype(jnp.float32)
    prepared = (w1p, b1.astype(jnp.float32),
                w2.astype(jnp.bfloat16), b2.astype(jnp.float32),
                w3.astype(jnp.bfloat16), b3.astype(jnp.float32),
                w4p, b4p)
    return prepared, out_dim


def generator_forward(x, prepared, out_dim, *, batch_tile=1024,
                      out_dtype=jnp.bfloat16, return_padded=False):
    """Fused generator forward.  x: (B, in_dim) f32.

    Returns (B, out_dim) in out_dtype, or the padded (b_pad, out_pad) buffer
    if return_padded=True (skips the final slice copy)."""
    (w1p, b1, w2b, b2, w3b, b3, w4p, b4p) = prepared
    B, in_dim = x.shape
    in_pad = w1p.shape[0]
    out_pad = w4p.shape[1]

    # --- batch tile selection -------------------------------------------------
    batch_tile = max(256, _round_up(batch_tile, 256))      # 256-multiple default
    half = _round_up(max((B + 1) // 2, 1), 128)             # keep >= 2 grid steps
    tb = max(128, min(batch_tile, half))                    # 128-row floor (bf16)
    b_pad = _round_up(B, tb)
    grid = (b_pad // tb,)

    # Pad + cast x.  Under jit, allow_input_fusion lets XLA fuse this producer
    # into the pallas_call operand, avoiding an extra HBM round trip.
    xp = jnp.pad(x.astype(jnp.bfloat16),
                 ((0, b_pad - B), (0, in_pad - in_dim)))

    def batch_map(i):
        return (i, 0)

    def resident_map(i):
        # Same block every grid step -> weights/biases stay resident in VMEM.
        return (0, 0)

    in_specs = [
        pl.BlockSpec((tb, in_pad), batch_map),      # x
        pl.BlockSpec((in_pad, H1), resident_map),   # w1
        pl.BlockSpec((1, H1), resident_map),        # b1
        pl.BlockSpec((H1, H2), resident_map),       # w2
        pl.BlockSpec((1, H2), resident_map),        # b2
        pl.BlockSpec((H2, H3), resident_map),       # w3
        pl.BlockSpec((1, H3), resident_map),        # b3
        pl.BlockSpec((H3, out_pad), resident_map),  # w4
        pl.BlockSpec((1, out_pad), resident_map),   # b4
    ]
    out_spec = pl.BlockSpec((tb, out_pad), batch_map)

    out_itemsize = jnp.dtype(out_dtype).itemsize
    weight_bytes = (2 * (in_pad * H1 + H1 * H2 + H2 * H3 + H3 * out_pad)
                    + 4 * (H1 + H2 + H3 + out_pad))

    # VMEM budget from the actual tile footprint (+4 MiB slack), capped at
    # 32 MiB so we never request all of v7x's 64 MiB physical VMEM.
    tile_io_bytes = 2 * (tb * in_pad * 2) + 2 * (tb * out_pad * out_itemsize)
    act_bytes = tb * (H1 + H2 + H3) * 6             # f32 + bf16 working set
    vmem_limit = int(min(32 << 20,
                         max(16 << 20,
                             2 * weight_bytes + tile_io_bytes + act_bytes
                             + (4 << 20))))

    flops = 2 * b_pad * (in_pad * H1 + H1 * H2 + H2 * H3 + H3 * out_pad)
    transcendentals = b_pad * out_pad               # tanh
    bytes_accessed = (b_pad * in_pad * 2 + weight_bytes
                      + b_pad * out_pad * out_itemsize)

    out = pl.pallas_call(
        generator_kernel,
        out_shape=jax.ShapeDtypeStruct((b_pad, out_pad), out_dtype),
        grid=grid,
        in_specs=in_specs,
        out_specs=out_spec,
        compiler_params=pltpu.CompilerParams(
            dimension_semantics=("parallel",),
            vmem_limit_bytes=vmem_limit,
            allow_input_fusion=[True] + [False] * 8,
        ),
        cost_estimate=pl.CostEstimate(
            flops=flops,
            transcendentals=transcendentals,
            bytes_accessed=bytes_accessed,
        ),
    )(xp, w1p, b1, w2b, b2, w3b, b3, w4p, b4p)

    if return_padded:
        return out
    return out[:B, :out_dim]


def init_params(key, input_dim, output_dim):
    dims = [(input_dim, H1), (H1, H2), (H2, H3), (H3, output_dim)]
    params = []
    for fan_in, fan_out in dims:
        kw, kb, key = jax.random.split(key, 3)
        # PyTorch nn.Linear default init: U(-1/sqrt(fan_in), 1/sqrt(fan_in))
        bound = 1.0 / jnp.sqrt(jnp.float32(fan_in))
        w = jax.random.uniform(kw, (fan_in, fan_out), jnp.float32, -bound, bound)
        b = jax.random.uniform(kb, (1, fan_out), jnp.float32, -bound, bound)
        params += [w, b]
    return tuple(params)


def reference_forward(x, params):
    (w1, b1, w2, b2, w3, b3, w4, b4) = params
    h = _leaky_relu(x @ w1 + b1)
    h = _leaky_relu(h @ w2 + b2)
    h = _leaky_relu(h @ w3 + b3)
    return jnp.tanh(h @ w4 + b4)


if __name__ == "__main__":
    key = jax.random.PRNGKey(0)
    kx, kp = jax.random.split(key)

    batch, input_dim, output_dim = 8, 16, 32
    x = jax.random.normal(kx, (batch, input_dim), jnp.float32)
    params = init_params(kp, input_dim, output_dim)

    # One-time weight prep (pad + bf16 cast), then a jitted forward so the
    # x pad/cast and output slice fuse around the pallas_call.
    prepared, out_dim = prepare_params(params)
    fwd = jax.jit(generator_forward, static_argnums=(2,))
    out = jax.block_until_ready(fwd(x, prepared, out_dim))

    ref = reference_forward(x, params)
    assert out.shape == (batch, output_dim), out.shape
    # bf16 matmul operands + bf16 output (f32 accumulation) vs f32 reference.
    err = float(jnp.max(jnp.abs(out.astype(jnp.float32) - ref)))
    assert err < 5e-2, err

    print("KERNEL_OK")
</pallas_src>

<mosaic_0001>
module attributes {stable_mosaic.version = 11 : i64} {
  func.func @generator_kernel(%arg0: i32, %arg1: memref<128x128xbf16, #tpu.memory_space<vmem>>, %arg2: memref<128x128xbf16, #tpu.memory_space<vmem>>, %arg3: memref<1x128xf32, #tpu.memory_space<vmem>>, %arg4: memref<128x256xbf16, #tpu.memory_space<vmem>>, %arg5: memref<1x256xf32, #tpu.memory_space<vmem>>, %arg6: memref<256x512xbf16, #tpu.memory_space<vmem>>, %arg7: memref<1x512xf32, #tpu.memory_space<vmem>>, %arg8: memref<512x128xbf16, #tpu.memory_space<vmem>>, %arg9: memref<1x128xf32, #tpu.memory_space<vmem>>, %arg10: memref<128x128xbf16, #tpu.memory_space<vmem>>) attributes {dimension_semantics = [#tpu.dimension_semantics<parallel>], iteration_bounds = array<i64: 1>, scalar_prefetch = 0 : i64, scratch_operands = 0 : i64, tpu.core_type = #tpu.core_type<tc>, window_params = [{transform_indices = @transform_0, window_bounds = array<i64: 128, 128>}, {pipeline_mode = #tpu.pipeline_mode<synchronous>, transform_indices = @transform_1, window_bounds = array<i64: 128, 128>}, {pipeline_mode = #tpu.pipeline_mode<synchronous>, transform_indices = @transform_2, window_bounds = array<i64: 1, 128>}, {pipeline_mode = #tpu.pipeline_mode<synchronous>, transform_indices = @transform_3, window_bounds = array<i64: 128, 256>}, {pipeline_mode = #tpu.pipeline_mode<synchronous>, transform_indices = @transform_4, window_bounds = array<i64: 1, 256>}, {pipeline_mode = #tpu.pipeline_mode<synchronous>, transform_indices = @transform_5, window_bounds = array<i64: 256, 512>}, {pipeline_mode = #tpu.pipeline_mode<synchronous>, transform_indices = @transform_6, window_bounds = array<i64: 1, 512>}, {pipeline_mode = #tpu.pipeline_mode<synchronous>, transform_indices = @transform_7, window_bounds = array<i64: 512, 128>}, {pipeline_mode = #tpu.pipeline_mode<synchronous>, transform_indices = @transform_8, window_bounds = array<i64: 1, 128>}, {transform_indices = @transform_9, window_bounds = array<i64: 128, 128>}]} {
    %c0 = arith.constant 0 : index
    %c0_0 = arith.constant 0 : index
    %0 = vector.load %arg1[%c0, %c0_0] : memref<128x128xbf16, #tpu.memory_space<vmem>>, vector<128x128xbf16>
    %c0_1 = arith.constant 0 : index
    %c0_2 = arith.constant 0 : index
    %1 = vector.load %arg2[%c0_1, %c0_2] : memref<128x128xbf16, #tpu.memory_space<vmem>>, vector<128x128xbf16>
    %cst = arith.constant dense<0.000000e+00> : vector<128x128xf32>
    %2 = tpu.matmul %0, %1, %cst {dimension_numbers = #tpu.dot_dimension_numbers<[1], [0], [0], [1], [0, 0, 1, 1], [], []>} : vector<128x128xbf16>, vector<128x128xbf16>, vector<128x128xf32> -> vector<128x128xf32>
    %c0_3 = arith.constant 0 : index
    %c0_4 = arith.constant 0 : index
    %3 = vector.load %arg3[%c0_3, %c0_4] : memref<1x128xf32, #tpu.memory_space<vmem>>, vector<1x128xf32>
    %4 = vector.broadcast %3 : vector<1x128xf32> to vector<128x128xf32>
    %5 = arith.addf %2, %4 : vector<128x128xf32>
    %cst_5 = arith.constant 2.000000e-01 : f32
    %6 = vector.broadcast %cst_5 : f32 to vector<128x128xf32>
    %7 = arith.mulf %6, %5 : vector<128x128xf32>
    %8 = arith.maximumf %5, %7 : vector<128x128xf32>
    %9 = arith.truncf %8 : vector<128x128xf32> to vector<128x128xbf16>
    %c0_6 = arith.constant 0 : index
    %c0_7 = arith.constant 0 : index
    %10 = vector.load %arg4[%c0_6, %c0_7] : memref<128x256xbf16, #tpu.memory_space<vmem>>, vector<128x256xbf16>
    %cst_8 = arith.constant dense<0.000000e+00> : vector<128x256xf32>
    %11 = tpu.matmul %9, %10, %cst_8 {dimension_numbers = #tpu.dot_dimension_numbers<[1], [0], [0], [1], [0, 0, 1, 1], [], []>} : vector<128x128xbf16>, vector<128x256xbf16>, vector<128x256xf32> -> vector<128x256xf32>
    %c0_9 = arith.constant 0 : index
    %c0_10 = arith.constant 0 : index
    %12 = vector.load %arg5[%c0_9, %c0_10] : memref<1x256xf32, #tpu.memory_space<vmem>>, vector<1x256xf32>
    %13 = vector.broadcast %12 : vector<1x256xf32> to vector<128x256xf32>
    %14 = arith.addf %11, %13 : vector<128x256xf32>
    %cst_11 = arith.constant 2.000000e-01 : f32
    %15 = vector.broadcast %cst_11 : f32 to vector<128x256xf32>
    %16 = arith.mulf %15, %14 : vector<128x256xf32>
    %17 = arith.maximumf %14, %16 : vector<128x256xf32>
    %18 = arith.truncf %17 : vector<128x256xf32> to vector<128x256xbf16>
    %c0_12 = arith.constant 0 : index
    %c0_13 = arith.constant 0 : index
    %19 = vector.load %arg6[%c0_12, %c0_13] : memref<256x512xbf16, #tpu.memory_space<vmem>>, vector<256x512xbf16>
    %cst_14 = arith.constant dense<0.000000e+00> : vector<128x512xf32>
    %20 = tpu.matmul %18, %19, %cst_14 {dimension_numbers = #tpu.dot_dimension_numbers<[1], [0], [0], [1], [0, 0, 1, 1], [], []>} : vector<128x256xbf16>, vector<256x512xbf16>, vector<128x512xf32> -> vector<128x512xf32>
    %c0_15 = arith.constant 0 : index
    %c0_16 = arith.constant 0 : index
    %21 = vector.load %arg7[%c0_15, %c0_16] : memref<1x512xf32, #tpu.memory_space<vmem>>, vector<1x512xf32>
    %22 = vector.broadcast %21 : vector<1x512xf32> to vector<128x512xf32>
    %23 = arith.addf %20, %22 : vector<128x512xf32>
    %cst_17 = arith.constant 2.000000e-01 : f32
    %24 = vector.broadcast %cst_17 : f32 to vector<128x512xf32>
    %25 = arith.mulf %24, %23 : vector<128x512xf32>
    %26 = arith.maximumf %23, %25 : vector<128x512xf32>
    %27 = arith.truncf %26 : vector<128x512xf32> to vector<128x512xbf16>
    %c0_18 = arith.constant 0 : index
    %c0_19 = arith.constant 0 : index
    %28 = vector.load %arg8[%c0_18, %c0_19] : memref<512x128xbf16, #tpu.memory_space<vmem>>, vector<512x128xbf16>
    %cst_20 = arith.constant dense<0.000000e+00> : vector<128x128xf32>
    %29 = tpu.matmul %27, %28, %cst_20 {dimension_numbers = #tpu.dot_dimension_numbers<[1], [0], [0], [1], [0, 0, 1, 1], [], []>} : vector<128x512xbf16>, vector<512x128xbf16>, vector<128x128xf32> -> vector<128x128xf32>
    %c0_21 = arith.constant 0 : index
    %c0_22 = arith.constant 0 : index
    %30 = vector.load %arg9[%c0_21, %c0_22] : memref<1x128xf32, #tpu.memory_space<vmem>>, vector<1x128xf32>
    %31 = vector.broadcast %30 : vector<1x128xf32> to vector<128x128xf32>
    %32 = arith.addf %29, %31 : vector<128x128xf32>
    %33 = math.tanh %32 : vector<128x128xf32>
    %34 = arith.truncf %33 : vector<128x128xf32> to vector<128x128xbf16>
    %c0_23 = arith.constant 0 : index
    %c0_24 = arith.constant 0 : index
    %35 = vector.load %arg10[%c0_23, %c0_24] : memref<128x128xbf16, #tpu.memory_space<vmem>>, vector<128x128xbf16>
    tpu.vector_store %arg10[%c0_23, %c0_24], %34 {strides = array<i32>} : memref<128x128xbf16, #tpu.memory_space<vmem>>, vector<128x128xbf16>,
    return
  }
  func.func @transform_0(%arg0: i32) -> (i32, i32) {
    %c0_i32 = arith.constant 0 : i32
    %c0_i32_0 = arith.constant 0 : i32
    return %arg0, %c0_i32 : i32, i32
  }
  func.func @transform_1(%arg0: i32) -> (i32, i32) {
    %c0_i32 = arith.constant 0 : i32
    %c0_i32_0 = arith.constant 0 : i32
    %c0_i32_1 = arith.constant 0 : i32
    return %c0_i32, %c0_i32_0 : i32, i32
  }
  func.func @transform_2(%arg0: i32) -> (i32, i32) {
    %c0_i32 = arith.constant 0 : i32
    %c0_i32_0 = arith.constant 0 : i32
    %c0_i32_1 = arith.constant 0 : i32
    return %c0_i32, %c0_i32_0 : i32, i32
  }
  func.func @transform_3(%arg0: i32) -> (i32, i32) {
    %c0_i32 = arith.constant 0 : i32
    %c0_i32_0 = arith.constant 0 : i32
    %c0_i32_1 = arith.constant 0 : i32
    return %c0_i32, %c0_i32_0 : i32, i32
  }
  func.func @transform_4(%arg0: i32) -> (i32, i32) {
    %c0_i32 = arith.constant 0 : i32
    %c0_i32_0 = arith.constant 0 : i32
    %c0_i32_1 = arith.constant 0 : i32
    return %c0_i32, %c0_i32_0 : i32, i32
  }
  func.func @transform_5(%arg0: i32) -> (i32, i32) {
    %c0_i32 = arith.constant 0 : i32
    %c0_i32_0 = arith.constant 0 : i32
    %c0_i32_1 = arith.constant 0 : i32
    return %c0_i32, %c0_i32_0 : i32, i32
  }
  func.func @transform_6(%arg0: i32) -> (i32, i32) {
    %c0_i32 = arith.constant 0 : i32
    %c0_i32_0 = arith.constant 0 : i32
    %c0_i32_1 = arith.constant 0 : i32
    return %c0_i32, %c0_i32_0 : i32, i32
  }
  func.func @transform_7(%arg0: i32) -> (i32, i32) {
    %c0_i32 = arith.constant 0 : i32
    %c0_i32_0 = arith.constant 0 : i32
    %c0_i32_1 = arith.constant 0 : i32
    return %c0_i32, %c0_i32_0 : i32, i32
  }
  func.func @transform_8(%arg0: i32) -> (i32, i32) {
    %c0_i32 = arith.constant 0 : i32
    %c0_i32_0 = arith.constant 0 : i32
    %c0_i32_1 = arith.constant 0 : i32
    return %c0_i32, %c0_i32_0 : i32, i32
  }
  func.func @transform_9(%arg0: i32) -> (i32, i32) {
    %c0_i32 = arith.constant 0 : i32
    %c0_i32_0 = arith.constant 0 : i32
    return %arg0, %c0_i32 : i32, i32
  }
}

</mosaic_0001>

<llo_original>
// kernel: generator_forward.2
$region0: #{generator_forward.2}
  #allocation0 [shape = 'u32[]', space=smem, size = 0x4, offset = 0x4, fixed_abs, tag = 'smem constant byte address 0x4 - core index']
  #allocation1 [shape = 'u32[72,128]{1,0:T(1,128)}', space=vmem, size = 0x9000, scoped, tag = 'internal scratch']
  #allocation2 [shape = 'u32[2048]{0}', space=vmem, size = 0x2000, scoped, tag = 'scoped memory for generator_forward.2']
  #allocation3 [shape = 'u32[2048]{0}', space=vmem, size = 0x2000, scoped, tag = 'scoped memory for generator_forward.2']
  #allocation4 [shape = 'u32[2048]{0}', space=vmem, size = 0x2000, scoped, tag = 'scoped memory for generator_forward.2']
  #allocation5 [shape = 'u32[2048]{0}', space=vmem, size = 0x2000, scoped, tag = 'scoped memory for generator_forward.2']
  #allocation6 [shape = 'u32[2048]{0}', space=vmem, size = 0x2000, scoped, tag = 'scoped memory for generator_forward.2']
  %s0 = inlined_call_operand.hbm [shape: bf16[128,128], index: 0, kind: input, shape index: {}]
  %s1 = inlined_call_operand.vmem [shape: f32[1,128], index: 1, kind: input, shape index: {}]
  %s2 = inlined_call_operand.hbm [shape: bf16[128,256], index: 2, kind: input, shape index: {}]
  %s3 = inlined_call_operand.vmem [shape: f32[1,256], index: 3, kind: input, shape index: {}]
  %s4 = inlined_call_operand.hbm [shape: bf16[256,512], index: 4, kind: input, shape index: {}]
  %s5 = inlined_call_operand.vmem [shape: f32[1,512], index: 5, kind: input, shape index: {}]
  %s6 = inlined_call_operand.hbm [shape: bf16[512,128], index: 6, kind: input, shape index: {}]
  %s7 = inlined_call_operand.vmem [shape: f32[1,128], index: 7, kind: input, shape index: {}]
  %s8 = inlined_call_operand.vmem [shape: bf16[8,16], index: 8, kind: input, shape index: {}]
  %s9 = inlined_call_operand.<no memory space> [shape: bf16[], index: 9, kind: input, shape index: {}]
  %s10 = inlined_call_operand.vmem [shape: bf16[128,128], index: 10, kind: output, shape index: {}]
  %s11 = sld [smem:[#allocation0]]
  $region62: #{generator_forward.2} parent=0
    _
  %s13 = ssub.s32 1, %s11
  %s14 = scalar_select 0, %s13, %s11
  %v15 = vstv %s9
  %v16 = vunpack.i.l.bf16 %v15
  %v18 = vunpack.i.h.bf16 %v15
  $region1: #{generator_forward.2} parent=0
    #allocation7 [shape = 'u8[32768]{0}', space=vmem, size = 0x8000, scoped, tag = 'input window, operand 1, single buffered']
    #allocation8 [shape = 's32[1]{0}', space=sflag, size = 0x4, scoped, tag = 'scoped memory for generator_forward.2']
    #allocation9 [shape = 'u8[65536]{0}', space=vmem, size = 0x10000, scoped, tag = 'input window, operand 3, single buffered']
    #allocation10 [shape = 's32[1]{0}', space=sflag, size = 0x4, scoped, tag = 'scoped memory for generator_forward.2']
    #allocation11 [shape = 'u8[262144]{0}', space=vmem, size = 0x40000, scoped, tag = 'input window, operand 5, single buffered']
    #allocation12 [shape = 'u8[131072]{0}', space=vmem, size = 0x20000, scoped, tag = 'input window, operand 7, single buffered']
    #allocation13 [shape = 's32[1]{0}', space=sflag, size = 0x4, scoped, tag = 'scoped memory for generator_forward.2']
    #allocation14 [shape = 'u8[32768]{0}', space=vmem, size = 0x8000, dematerialized = true, scoped, tag = 'FusionAdapter Buffer %fusion.1 = bf16[128,128]{1,0:T(8,128)(2,1)} fusion(%param_8.1, %param_9), kind=kLoop, calls=%fused_computation.1.clone, metadata={op_name="jit(generator_forward)/jit(_pad)/pad" stack_frame_id=8}']
    %20 = vsyncpa [#allocation8], 0
    %21 = vsyncpa [#allocation10], 0
    %22 = vsyncpa [#allocation13], 0
    // Predicated region
    $region2: #{generator_forward.2} parent=1 // pred_check
      _
    $region3: #{generator_forward.2} parent=1 // pred_check_branch
      %24 = sbr.rel (0) target = $region5
    $region4: #{generator_forward.2} parent=1 // pred_region
      _
    $region5: #{generator_forward.2} parent=1 // pred_fallthru
      _
    // Predicated region
    $region6: #{generator_forward.2} parent=1 // pred_check
      _
    $region7: #{generator_forward.2} parent=1 // pred_check_branch
      %26 = sbr.rel (0) target = $region9
    $region8: #{generator_forward.2} parent=1 // pred_region
      %28 = vsyncadd [#allocation8], 0
      %s29 = sshll.u32 %s0, 4
      %s30 = int_to_ptr.hbm [resolvable:$true] %s29
      %s31 = sshll.u32 [#allocation7], 4
      %s32 = int_to_ptr.vmem [resolvable:$true] %s31
      %37 = dma.hbm_to_vmem [thread:$0]  %s30, 1024, %s32, [#allocation8], 64, 64, 4
    $region9: #{generator_forward.2} parent=1 // pred_fallthru
      _
    // Predicated region
    $region10: #{generator_forward.2} parent=1 // pred_check
      _
    $region11: #{generator_forward.2} parent=1 // pred_check_branch
      %39 = sbr.rel (0) target = $region13
    $region12: #{generator_forward.2} parent=1 // pred_region
      _
    $region13: #{generator_forward.2} parent=1 // pred_fallthru
      _
    // Predicated region
    $region14: #{generator_forward.2} parent=1 // pred_check
      _
    $region15: #{generator_forward.2} parent=1 // pred_check_branch
      %41 = sbr.rel (0) target = $region17
    $region16: #{generator_forward.2} parent=1 // pred_region
      %43 = vsyncadd [#allocation10], 0
      %s44 = sshll.u32 %s2, 4
      %s45 = int_to_ptr.hbm [resolvable:$true] %s44
      %s46 = sshll.u32 [#allocation9], 4
      %s47 = int_to_ptr.vmem [resolvable:$true] %s46
      %52 = dma.hbm_to_vmem [thread:$0]  %s45, 2048, %s47, [#allocation10], 128, 128, 8
    $region17: #{generator_forward.2} parent=1 // pred_fallthru
      _
    // Predicated region
    $region18: #{generator_forward.2} parent=1 // pred_check
      _
    $region19: #{generator_forward.2} parent=1 // pred_check_branch
      %54 = sbr.rel (0) target = $region21
    $region20: #{generator_forward.2} parent=1 // pred_region
      _
    $region21: #{generator_forward.2} parent=1 // pred_fallthru
      _
    // Predicated region
    $region22: #{generator_forward.2} parent=1 // pred_check
      _
    $region23: #{generator_forward.2} parent=1 // pred_check_branch
      %56 = sbr.rel (0) target = $region25
    $region24: #{generator_forward.2} parent=1 // pred_region
      %58 = vsyncadd [#allocation10], 0
      %s59 = sshll.u32 %s4, 4
      %s60 = int_to_ptr.hbm [resolvable:$true] %s59
      %s61 = sshll.u32 [#allocation11], 4
      %s62 = int_to_ptr.vmem [resolvable:$true] %s61
      %67 = dma.hbm_to_vmem [thread:$0]  %s60, 8192, %s62, [#allocation10], 256, 256, 16
    $region25: #{generator_forward.2} parent=1 // pred_fallthru
      _
    // Predicated region
    $region26: #{generator_forward.2} parent=1 // pred_check
      _
    $region27: #{generator_forward.2} parent=1 // pred_check_branch
      %69 = sbr.rel (0) target = $region29
    $region28: #{generator_forward.2} parent=1 // pred_region
      _
    $region29: #{generator_forward.2} parent=1 // pred_fallthru
      _
    // Predicated region
    $region30: #{generator_forward.2} parent=1 // pred_check
      _
    $region31: #{generator_forward.2} parent=1 // pred_check_branch
      %71 = sbr.rel (0) target = $region33
    $region32: #{generator_forward.2} parent=1 // pred_region
      %73 = vsyncadd [#allocation13], 0
      %s74 = sshll.u32 %s6, 4
      %s75 = int_to_ptr.hbm [resolvable:$true] %s74
      %s76 = sshll.u32 [#allocation12], 4
      %s77 = int_to_ptr.vmem [resolvable:$true] %s76
      %82 = dma.hbm_to_vmem [thread:$0]  %s75, 4096, %s77, [#allocation13], 64, 64, 4
    $region33: #{generator_forward.2} parent=1 // pred_fallthru
      _
    // Predicated region
    $region34: #{generator_forward.2} parent=1 // pred_check
      _
    $region35: #{generator_forward.2} parent=1 // pred_check_branch
      %84 = sbr.rel (0) target = $region37
    $region36: #{generator_forward.2} parent=1 // pred_region
      _
    $region37: #{generator_forward.2} parent=1 // pred_fallthru
      _
    // Predicated region
    $region38: #{generator_forward.2} parent=1 // pred_check
      _
    $region39: #{generator_forward.2} parent=1 // pred_check_branch
      %86 = sbr.rel (0) target = $region41
    $region40: #{generator_forward.2} parent=1 // pred_region
      %88 = dma.done [#allocation8], 1024
    $region41: #{generator_forward.2} parent=1 // pred_fallthru
      _
    // Predicated region
    $region42: #{generator_forward.2} parent=1 // pred_check
      _
    $region43: #{generator_forward.2} parent=1 // pred_check_branch
      %90 = sbr.rel (0) target = $region45
    $region44: #{generator_forward.2} parent=1 // pred_region
      %92 = dma.done [#allocation10], 2048
    $region45: #{generator_forward.2} parent=1 // pred_fallthru
      _
    // Predicated region
    $region46: #{generator_forward.2} parent=1 // pred_check
      _
    $region47: #{generator_forward.2} parent=1 // pred_check_branch
      %94 = sbr.rel (0) target = $region49
    $region48: #{generator_forward.2} parent=1 // pred_region
      %96 = dma.done [#allocation10], 8192
    $region49: #{generator_forward.2} parent=1 // pred_fallthru
      _
    // Predicated region
    $region50: #{generator_forward.2} parent=1 // pred_check
      _
    $region51: #{generator_forward.2} parent=1 // pred_check_branch
      %98 = sbr.rel (0) target = $region53
    $region52: #{generator_forward.2} parent=1 // pred_region
      %100 = dma.done [#allocation13], 4096
    $region53: #{generator_forward.2} parent=1 // pred_fallthru
      _
    %s102 = sor.u32 255, 127
    %s103 = sand.u32 %s102, 85
    %s104 = sshrl.u32 %s103, 1
    %s105 = sor.u32 %s103, %s104
    %s106 = sand.u32 51, %s105
    %s107 = sshrl.u32 %s106, 2
    %s108 = sor.u32 %s106, %s107
    %s109 = sand.u32 15, %s108
    %v110 = vld [vmem:[%s8] sm:%s109]
    %v111 = vunpack.c.l.bf16 %v110
    %v112 = vunpack.c.h.bf16 %v110
    %v113 = vlaneseq
    %v114 = vand.u32 %v113, 127
    %vm116 = vcmp.lt.s32.totalorder %v114, 16
    %v117 = vsel %vm116, %v111, %v16
    %v118 = vpack.c.bf16 0.0, %v117
    %s120 = ssub.s32 16, 1
    %121 = vst [vmem:[#allocation14] sm:%s120] %v118
    %s122 = scalar_lea.vmem [#allocation14], 4
    %v123 = vpack.c.bf16 0.0, %v16
    %s125 = ssub.s32 16, 1
    %126 = vst [vmem:[%s122] sm:%s125] %v123
    %s127 = scalar_lea.vmem [#allocation14], 8
    %v128 = vpack.c.bf16 0.0, %v16
    %s130 = ssub.s32 16, 1
    %131 = vst [vmem:[%s127] sm:%s130] %v128
    %s132 = scalar_lea.vmem [#allocation14], 12
    %v133 = vpack.c.bf16 0.0, %v16
    %s135 = ssub.s32 16, 1
    %136 = vst [vmem:[%s132] sm:%s135] %v133
    %s137 = scalar_lea.vmem [#allocation14], 16
    %v138 = vpack.c.bf16 0.0, %v16
    %s140 = ssub.s32 16, 1
    %141 = vst [vmem:[%s137] sm:%s140] %v138
    %s142 = scalar_lea.vmem [#allocation14], 20
    %v143 = vpack.c.bf16 0.0, %v16
    %s145 = ssub.s32 16, 1
    %146 = vst [vmem:[%s142] sm:%s145] %v143
    %s147 = scalar_lea.vmem [#allocation14], 24
    %v148 = vpack.c.bf16 0.0, %v16
    %s150 = ssub.s32 16, 1
    %151 = vst [vmem:[%s147] sm:%s150] %v148
    %s152 = scalar_lea.vmem [#allocation14], 28
    %v153 = vpack.c.bf16 0.0, %v16
    %s155 = ssub.s32 16, 1
    %156 = vst [vmem:[%s152] sm:%s155] %v153
    %s157 = scalar_lea.vmem [#allocation14], 32
    %v158 = vpack.c.bf16 0.0, %v16
    %s160 = ssub.s32 16, 1
    %161 = vst [vmem:[%s157] sm:%s160] %v158
    %s162 = scalar_lea.vmem [#allocation14], 36
    %v163 = vpack.c.bf16 0.0, %v16
    %s165 = ssub.s32 16, 1
    %166 = vst [vmem:[%s162] sm:%s165] %v163
    %s167 = scalar_lea.vmem [#allocation14], 40
    %v168 = vpack.c.bf16 0.0, %v16
    %s170 = ssub.s32 16, 1
    %171 = vst [vmem:[%s167] sm:%s170] %v168
    %s172 = scalar_lea.vmem [#allocation14], 44
    %v173 = vpack.c.bf16 0.0, %v16
    %s175 = ssub.s32 16, 1
    %176 = vst [vmem:[%s172] sm:%s175] %v173
    %s177 = scalar_lea.vmem [#allocation14], 48
    %v178 = vpack.c.bf16 0.0, %v16
    %s180 = ssub.s32 16, 1
    %181 = vst [vmem:[%s177] sm:%s180] %v178
    %s182 = scalar_lea.vmem [#allocation14], 52
    %v183 = vpack.c.bf16 0.0, %v16
    %s185 = ssub.s32 16, 1
    %186 = vst [vmem:[%s182] sm:%s185] %v183
    %s187 = scalar_lea.vmem [#allocation14], 56
    %v188 = vpack.c.bf16 0.0, %v16
    %s190 = ssub.s32 16, 1
    %191 = vst [vmem:[%s187] sm:%s190] %v188
    %s192 = scalar_lea.vmem [#allocation14], 60
    %v193 = vpack.c.bf16 0.0, %v16
    %s195 = ssub.s32 16, 1
    %196 = vst [vmem:[%s192] sm:%s195] %v193
    %v197 = vld [vmem:[#allocation14] sm:$0xf]
    %v198 = vld [vmem:[#allocation14 + $0x4] sm:$0xf]
    %v199 = vld [vmem:[#allocation14 + $0x8] sm:$0xf]
    %v200 = vld [vmem:[#allocation14 + $0xc] sm:$0xf]
    %v201 = vld [vmem:[#allocation14 + $0x10] sm:$0xf]
    %v202 = vld [vmem:[#allocation14 + $0x14] sm:$0xf]
    %v203 = vld [vmem:[#allocation14 + $0x18] sm:$0xf]
    %v204 = vld [vmem:[#allocation14 + $0x1c] sm:$0xf]
    %v205 = vld [vmem:[#allocation14 + $0x20] sm:$0xf]
    %v206 = vld [vmem:[#allocation14 + $0x24] sm:$0xf]
    %v207 = vld [vmem:[#allocation14 + $0x28] sm:$0xf]
    %v208 = vld [vmem:[#allocation14 + $0x2c] sm:$0xf]
    %v209 = vld [vmem:[#allocation14 + $0x30] sm:$0xf]
    %v210 = vld [vmem:[#allocation14 + $0x34] sm:$0xf]
    %v211 = vld [vmem:[#allocation14 + $0x38] sm:$0xf]
    %v212 = vld [vmem:[#allocation14 + $0x3c] sm:$0xf]
    %v213 = vld [vmem:[#allocation7] sm:$0xf]
    %v214 = vld [vmem:[#allocation7 + $0x4] sm:$0xf]
    %v215 = vld [vmem:[#allocation7 + $0x8] sm:$0xf]
    %v216 = vld [vmem:[#allocation7 + $0xc] sm:$0xf]
    %v217 = vld [vmem:[#allocation7 + $0x10] sm:$0xf]
    %v218 = vld [vmem:[#allocation7 + $0x14] sm:$0xf]
    %v219 = vld [vmem:[#allocation7 + $0x18] sm:$0xf]
    %v220 = vld [vmem:[#allocation7 + $0x1c] sm:$0xf]
    %v221 = vld [vmem:[#allocation7 + $0x20] sm:$0xf]
    %v222 = vld [vmem:[#allocation7 + $0x24] sm:$0xf]
    %v223 = vld [vmem:[#allocation7 + $0x28] sm:$0xf]
    %v224 = vld [vmem:[#allocation7 + $0x2c] sm:$0xf]
    %v225 = vld [vmem:[#allocation7 + $0x30] sm:$0xf]
    %v226 = vld [vmem:[#allocation7 + $0x34] sm:$0xf]
    %v227 = vld [vmem:[#allocation7 + $0x38] sm:$0xf]
    %v228 = vld [vmem:[#allocation7 + $0x3c] sm:$0xf]
    %v229 = vld [vmem:[%s1] sm:$0x1]
    %v231 = vperm.slane %v229, 0
    %v249 = vunpack.c.l.b16 %v197
    %v250 = vunpack.c.l.b16 %v198
    %v251 = vunpack.c.l.b16 %v199
    %v252 = vunpack.c.l.b16 %v200
    %v253 = vunpack.c.l.b16 %v201
    %v254 = vunpack.c.l.b16 %v202
    %v255 = vunpack.c.l.b16 %v203
    %v256 = vunpack.c.l.b16 %v204
    %v257 = vunpack.c.l.b16 %v205
    %v258 = vunpack.c.l.b16 %v206
    %v259 = vunpack.c.l.b16 %v207
    %v260 = vunpack.c.l.b16 %v208
    %v261 = vunpack.c.l.b16 %v209
    %v262 = vunpack.c.l.b16 %v210
    %v263 = vunpack.c.l.b16 %v211
    %v264 = vunpack.c.l.b16 %v212
    %v265 = vpack.c.b16 %v250, %v249
    %v266 = vpack.c.b16 %v252, %v251
    %v267 = vpack.c.b16 %v254, %v253
    %v268 = vpack.c.b16 %v256, %v255
    %v269 = vpack.c.b16 %v258, %v257
    %v270 = vpack.c.b16 %v260, %v259
    %v271 = vpack.c.b16 %v262, %v261
    %v272 = vpack.c.b16 %v264, %v263
    %v297 = vunpack.c.l.b16 %v213
    %v298 = vunpack.c.l.b16 %v214
    %v299 = vunpack.c.l.b16 %v215
    %v300 = vunpack.c.l.b16 %v216
    %v301 = vunpack.c.l.b16 %v217
    %v302 = vunpack.c.l.b16 %v218
    %v303 = vunpack.c.l.b16 %v219
    %v304 = vunpack.c.l.b16 %v220
    %v305 = vunpack.c.l.b16 %v221
    %v306 = vunpack.c.l.b16 %v222
    %v307 = vunpack.c.l.b16 %v223
    %v308 = vunpack.c.l.b16 %v224
    %v309 = vunpack.c.l.b16 %v225
    %v310 = vunpack.c.l.b16 %v226
    %v311 = vunpack.c.l.b16 %v227
    %v312 = vunpack.c.l.b16 %v228
    %v313 = vpack.c.b16 %v298, %v297
    %v314 = vpack.c.b16 %v300, %v299
    %v315 = vpack.c.b16 %v302, %v301
    %v316 = vpack.c.b16 %v304, %v303
    %v317 = vpack.c.b16 %v306, %v305
    %v318 = vpack.c.b16 %v308, %v307
    %v319 = vpack.c.b16 %v310, %v309
    %v320 = vpack.c.b16 %v312, %v311
    %329 = vmatpush.bf16.msra.mxu0 %v320
    %330 = vmatpush.bf16.msra.mxu0 %v319
    %331 = vmatpush.bf16.msra.mxu0 %v318
    %332 = vmatpush.bf16.msra.mxu0 %v317
    %333 = vmatpush.bf16.msra.mxu0 %v316
    %334 = vmatpush.bf16.msra.mxu0 %v315
    %335 = vmatpush.bf16.msra.mxu0 %v314
    %336 = vmatpush.bf16.msra.mxu0 %v313
    %337 = vmatmul.bf16.gmra.mxu0 %v265
    %v338 = vpop.f32.mrf.mxu0
    %v339 = vadd.f32 %v231, %v338
    %v340 = vpop.f32.mrf.mxu0
    %v341 = vadd.f32 %v231, %v340
    %342 = vmatmul.bf16.gmra.mxu0 %v266
    %v343 = vpop.f32.mrf.mxu0
    %v344 = vadd.f32 %v231, %v343
    %v345 = vpop.f32.mrf.mxu0
    %v346 = vadd.f32 %v231, %v345
    %347 = vmatmul.bf16.gmra.mxu0 %v267
    %v348 = vpop.f32.mrf.mxu0
    %v349 = vadd.f32 %v231, %v348
    %v350 = vpop.f32.mrf.mxu0
    %v351 = vadd.f32 %v231, %v350
    %352 = vmatmul.bf16.gmra.mxu0 %v268
    %v353 = vpop.f32.mrf.mxu0
    %v354 = vadd.f32 %v231, %v353
    %v355 = vpop.f32.mrf.mxu0
    %v356 = vadd.f32 %v231, %v355
    %357 = vmatmul.bf16.gmra.mxu0 %v269
    %v358 = vpop.f32.mrf.mxu0
    %v359 = vadd.f32 %v231, %v358
    %v360 = vpop.f32.mrf.mxu0
    %v361 = vadd.f32 %v231, %v360
    %362 = vmatmul.bf16.gmra.mxu0 %v270
    %v363 = vpop.f32.mrf.mxu0
    %v364 = vadd.f32 %v231, %v363
    %v365 = vpop.f32.mrf.mxu0
    %v366 = vadd.f32 %v231, %v365
    %367 = vmatmul.bf16.gmra.mxu0 %v271
    %v368 = vpop.f32.mrf.mxu0
    %v369 = vadd.f32 %v231, %v368
    %v370 = vpop.f32.mrf.mxu0
    %v371 = vadd.f32 %v231, %v370
    %372 = vmatmul.bf16.gmra.mxu0 %v272
    %v373 = vpop.f32.mrf.mxu0
    %v374 = vadd.f32 %v231, %v373
    %v375 = vpop.f32.mrf.mxu0
    %v376 = vadd.f32 %v231, %v375
    %377 = vdwg.mxu0
    %v378 = vmul.f32 %v339, 0.2
    %v379 = vmul.f32 %v341, 0.2
    %v380 = vmul.f32 %v344, 0.2
    %v381 = vmul.f32 %v346, 0.2
    %v382 = vmul.f32 %v349, 0.2
    %v383 = vmul.f32 %v351, 0.2
    %v384 = vmul.f32 %v354, 0.2
    %v385 = vmul.f32 %v356, 0.2
    %v386 = vmul.f32 %v359, 0.2
    %v387 = vmul.f32 %v361, 0.2
    %v388 = vmul.f32 %v364, 0.2
    %v389 = vmul.f32 %v366, 0.2
    %v390 = vmul.f32 %v369, 0.2
    %v391 = vmul.f32 %v371, 0.2
    %v392 = vmul.f32 %v374, 0.2
    %v393 = vmul.f32 %v376, 0.2
    %v394 = vmax.f32 %v339, %v378
    %v395 = vmax.f32 %v341, %v379
    %v396 = vmax.f32 %v344, %v380
    %v397 = vmax.f32 %v346, %v381
    %v398 = vmax.f32 %v349, %v382
    %v399 = vmax.f32 %v351, %v383
    %v400 = vmax.f32 %v354, %v384
    %v401 = vmax.f32 %v356, %v385
    %v402 = vmax.f32 %v359, %v386
    %v403 = vmax.f32 %v361, %v387
    %v404 = vmax.f32 %v364, %v388
    %v405 = vmax.f32 %v366, %v389
    %v406 = vmax.f32 %v369, %v390
    %v407 = vmax.f32 %v371, %v391
    %v408 = vmax.f32 %v374, %v392
    %v409 = vmax.f32 %v376, %v393
    %v410 = vpack.c.bf16 %v395, %v394
    %v411 = vpack.c.bf16 %v397, %v396
    %v412 = vpack.c.bf16 %v399, %v398
    %v413 = vpack.c.bf16 %v401, %v400
    %v414 = vpack.c.bf16 %v403, %v402
    %v415 = vpack.c.bf16 %v405, %v404
    %v416 = vpack.c.bf16 %v407, %v406
    %v417 = vpack.c.bf16 %v409, %v408
    %v418 = vld [vmem:[#allocation9] sm:$0xff]
    %v419 = vld [vmem:[#allocation9 + $0x8] sm:$0xff]
    %v420 = vld [vmem:[#allocation9 + $0x10] sm:$0xff]
    %v421 = vld [vmem:[#allocation9 + $0x18] sm:$0xff]
    %v422 = vld [vmem:[#allocation9 + $0x20] sm:$0xff]
    %v423 = vld [vmem:[#allocation9 + $0x28] sm:$0xff]
    %v424 = vld [vmem:[#allocation9 + $0x30] sm:$0xff]
    %v425 = vld [vmem:[#allocation9 + $0x38] sm:$0xff]
    %v426 = vld [vmem:[#allocation9 + $0x40] sm:$0xff]
    %v427 = vld [vmem:[#allocation9 + $0x48] sm:$0xff]
    %v428 = vld [vmem:[#allocation9 + $0x50] sm:$0xff]
    %v429 = vld [vmem:[#allocation9 + $0x58] sm:$0xff]
    %v430 = vld [vmem:[#allocation9 + $0x60] sm:$0xff]
    %v431 = vld [vmem:[#allocation9 + $0x68] sm:$0xff]
    %v432 = vld [vmem:[#allocation9 + $0x70] sm:$0xff]
    %v433 = vld [vmem:[#allocation9 + $0x78] sm:$0xff]
    %v434 = vld [vmem:[%s3] sm:$0x3]
    %v436 = vperm.slane %v434, 0
    %v437 = vperm.slane %v434, 1
    %v456 = vunpack.c.l.b16 %v418
    %v457 = vunpack.c.h.b16 %v418
    %v458 = vunpack.c.l.b16 %v419
    %v459 = vunpack.c.h.b16 %v419
    %v460 = vunpack.c.l.b16 %v420
    %v461 = vunpack.c.h.b16 %v420
    %v462 = vunpack.c.l.b16 %v421
    %v463 = vunpack.c.h.b16 %v421
    %v464 = vunpack.c.l.b16 %v422
    %v465 = vunpack.c.h.b16 %v422
    %v466 = vunpack.c.l.b16 %v423
    %v467 = vunpack.c.h.b16 %v423
    %v468 = vunpack.c.l.b16 %v424
    %v469 = vunpack.c.h.b16 %v424
    %v470 = vunpack.c.l.b16 %v425
    %v471 = vunpack.c.h.b16 %v425
    %v472 = vunpack.c.l.b16 %v426
    %v473 = vunpack.c.h.b16 %v426
    %v474 = vunpack.c.l.b16 %v427
    %v475 = vunpack.c.h.b16 %v427
    %v476 = vunpack.c.l.b16 %v428
    %v477 = vunpack.c.h.b16 %v428
    %v478 = vunpack.c.l.b16 %v429
    %v479 = vunpack.c.h.b16 %v429
    %v480 = vunpack.c.l.b16 %v430
    %v481 = vunpack.c.h.b16 %v430
    %v482 = vunpack.c.l.b16 %v431
    %v483 = vunpack.c.h.b16 %v431
    %v484 = vunpack.c.l.b16 %v432
    %v485 = vunpack.c.h.b16 %v432
    %v486 = vunpack.c.l.b16 %v433
    %v487 = vunpack.c.h.b16 %v433
    %v488 = vpack.c.b16 %v458, %v456
    %v489 = vpack.c.b16 %v459, %v457
    %v490 = vpack.c.b16 %v462, %v460
    %v491 = vpack.c.b16 %v463, %v461
    %v492 = vpack.c.b16 %v466, %v464
    %v493 = vpack.c.b16 %v467, %v465
    %v494 = vpack.c.b16 %v470, %v468
    %v495 = vpack.c.b16 %v471, %v469
    %v496 = vpack.c.b16 %v474, %v472
    %v497 = vpack.c.b16 %v475, %v473
    %v498 = vpack.c.b16 %v478, %v476
    %v499 = vpack.c.b16 %v479, %v477
    %v500 = vpack.c.b16 %v482, %v480
    %v501 = vpack.c.b16 %v483, %v481
    %v502 = vpack.c.b16 %v486, %v484
    %v503 = vpack.c.b16 %v487, %v485
    %520 = vmatpush.bf16.msra.mxu0 %v502
    %521 = vmatpush.bf16.msra.mxu0 %v500
    %522 = vmatpush.bf16.msra.mxu0 %v498
    %523 = vmatpush.bf16.msra.mxu0 %v496
    %524 = vmatpush.bf16.msra.mxu0 %v494
    %525 = vmatpush.bf16.msra.mxu0 %v492
    %526 = vmatpush.bf16.msra.mxu0 %v490
    %527 = vmatpush.bf16.msra.mxu0 %v488
    %528 = vmatmul.bf16.gmra.mxu0 %v410
    %v529 = vpop.f32.mrf.mxu0
    %v530 = vadd.f32 %v436, %v529
    %v531 = vpop.f32.mrf.mxu0
    %v532 = vadd.f32 %v436, %v531
    %533 = vmatmul.bf16.gmra.mxu0 %v411
    %v534 = vpop.f32.mrf.mxu0
    %v535 = vadd.f32 %v436, %v534
    %v536 = vpop.f32.mrf.mxu0
    %v537 = vadd.f32 %v436, %v536
    %538 = vmatmul.bf16.gmra.mxu0 %v412
    %v539 = vpop.f32.mrf.mxu0
    %v540 = vadd.f32 %v436, %v539
    %v541 = vpop.f32.mrf.mxu0
    %v542 = vadd.f32 %v436, %v541
    %543 = vmatmul.bf16.gmra.mxu0 %v413
    %v544 = vpop.f32.mrf.mxu0
    %v545 = vadd.f32 %v436, %v544
    %v546 = vpop.f32.mrf.mxu0
    %v547 = vadd.f32 %v436, %v546
    %548 = vmatmul.bf16.gmra.mxu0 %v414
    %v549 = vpop.f32.mrf.mxu0
    %v550 = vadd.f32 %v436, %v549
    %v551 = vpop.f32.mrf.mxu0
    %v552 = vadd.f32 %v436, %v551
    %553 = vmatmul.bf16.gmra.mxu0 %v415
    %v554 = vpop.f32.mrf.mxu0
    %v555 = vadd.f32 %v436, %v554
    %v556 = vpop.f32.mrf.mxu0
    %v557 = vadd.f32 %v436, %v556
    %558 = vmatmul.bf16.gmra.mxu0 %v416
    %v559 = vpop.f32.mrf.mxu0
    %v560 = vadd.f32 %v436, %v559
    %v561 = vpop.f32.mrf.mxu0
    %v562 = vadd.f32 %v436, %v561
    %563 = vmatmul.bf16.gmra.mxu0 %v417
    %v564 = vpop.f32.mrf.mxu0
    %v565 = vadd.f32 %v436, %v564
    %v566 = vpop.f32.mrf.mxu0
    %v567 = vadd.f32 %v436, %v566
    %568 = vdwg.mxu0
    %569 = vmatpush.bf16.msra.mxu0 %v503
    %570 = vmatpush.bf16.msra.mxu0 %v501
    %571 = vmatpush.bf16.msra.mxu0 %v499
    %572 = vmatpush.bf16.msra.mxu0 %v497
    %573 = vmatpush.bf16.msra.mxu0 %v495
    %574 = vmatpush.bf16.msra.mxu0 %v493
    %575 = vmatpush.bf16.msra.mxu0 %v491
    %576 = vmatpush.bf16.msra.mxu0 %v489
    %577 = vmatmul.bf16.gmra.mxu0 %v410
    %v578 = vpop.f32.mrf.mxu0
    %v579 = vadd.f32 %v437, %v578
    %v580 = vpop.f32.mrf.mxu0
    %v581 = vadd.f32 %v437, %v580
    %582 = vmatmul.bf16.gmra.mxu0 %v411
    %v583 = vpop.f32.mrf.mxu0
    %v584 = vadd.f32 %v437, %v583
    %v585 = vpop.f32.mrf.mxu0
    %v586 = vadd.f32 %v437, %v585
    %587 = vmatmul.bf16.gmra.mxu0 %v412
    %v588 = vpop.f32.mrf.mxu0
    %v589 = vadd.f32 %v437, %v588
    %v590 = vpop.f32.mrf.mxu0
    %v591 = vadd.f32 %v437, %v590
    %592 = vmatmul.bf16.gmra.mxu0 %v413
    %v593 = vpop.f32.mrf.mxu0
    %v594 = vadd.f32 %v437, %v593
    %v595 = vpop.f32.mrf.mxu0
    %v596 = vadd.f32 %v437, %v595
    %597 = vmatmul.bf16.gmra.mxu0 %v414
    %v598 = vpop.f32.mrf.mxu0
    %v599 = vadd.f32 %v437, %v598
    %v600 = vpop.f32.mrf.mxu0
    %v601 = vadd.f32 %v437, %v600
    %602 = vmatmul.bf16.gmra.mxu0 %v415
    %v603 = vpop.f32.mrf.mxu0
    %v604 = vadd.f32 %v437, %v603
    %v605 = vpop.f32.mrf.mxu0
    %v606 = vadd.f32 %v437, %v605
    %607 = vmatmul.bf16.gmra.mxu0 %v416
    %v608 = vpop.f32.mrf.mxu0
    %v609 = vadd.f32 %v437, %v608
    %v610 = vpop.f32.mrf.mxu0
    %v611 = vadd.f32 %v437, %v610
    %612 = vmatmul.bf16.gmra.mxu0 %v417
    %v613 = vpop.f32.mrf.mxu0
    %v614 = vadd.f32 %v437, %v613
    %v615 = vpop.f32.mrf.mxu0
    %v616 = vadd.f32 %v437, %v615
    %617 = vdwg.mxu0
    %v618 = vmul.f32 %v530, 0.2
    %v619 = vmul.f32 %v579, 0.2
    %v620 = vmul.f32 %v532, 0.2
    %v621 = vmul.f32 %v581, 0.2
    %v622 = vmul.f32 %v535, 0.2
    %v623 = vmul.f32 %v584, 0.2
    %v624 = vmul.f32 %v537, 0.2
    %v625 = vmul.f32 %v586, 0.2
    %v626 = vmul.f32 %v540, 0.2
    %v627 = vmul.f32 %v589, 0.2
    %v628 = vmul.f32 %v542, 0.2
    %v629 = vmul.f32 %v591, 0.2
    %v630 = vmul.f32 %v545, 0.2
    %v631 = vmul.f32 %v594, 0.2
    %v632 = vmul.f32 %v547, 0.2
    %v633 = vmul.f32 %v596, 0.2
    %v634 = vmul.f32 %v550, 0.2
    %v635 = vmul.f32 %v599, 0.2
    %v636 = vmul.f32 %v552, 0.2
    %v637 = vmul.f32 %v601, 0.2
    %v638 = vmul.f32 %v555, 0.2
    %v639 = vmul.f32 %v604, 0.2
    %v640 = vmul.f32 %v557, 0.2
    %v641 = vmul.f32 %v606, 0.2
    %v642 = vmul.f32 %v560, 0.2
    %v643 = vmul.f32 %v609, 0.2
    %v644 = vmul.f32 %v562, 0.2
    %v645 = vmul.f32 %v611, 0.2
    %v646 = vmul.f32 %v565, 0.2
    %v647 = vmul.f32 %v614, 0.2
    %v648 = vmul.f32 %v567, 0.2
    %v649 = vmul.f32 %v616, 0.2
    %v650 = vmax.f32 %v530, %v618
    %v651 = vmax.f32 %v579, %v619
    %v652 = vmax.f32 %v532, %v620
    %v653 = vmax.f32 %v581, %v621
    %v654 = vmax.f32 %v535, %v622
    %v655 = vmax.f32 %v584, %v623
    %v656 = vmax.f32 %v537, %v624
    %v657 = vmax.f32 %v586, %v625
    %v658 = vmax.f32 %v540, %v626
    %v659 = vmax.f32 %v589, %v627
    %v660 = vmax.f32 %v542, %v628
    %v661 = vmax.f32 %v591, %v629
    %v662 = vmax.f32 %v545, %v630
    %v663 = vmax.f32 %v594, %v631
    %v664 = vmax.f32 %v547, %v632
    %v665 = vmax.f32 %v596, %v633
    %v666 = vmax.f32 %v550, %v634
    %v667 = vmax.f32 %v599, %v635
    %v668 = vmax.f32 %v552, %v636
    %v669 = vmax.f32 %v601, %v637
    %v670 = vmax.f32 %v555, %v638
    %v671 = vmax.f32 %v604, %v639
    %v672 = vmax.f32 %v557, %v640
    %v673 = vmax.f32 %v606, %v641
    %v674 = vmax.f32 %v560, %v642
    %v675 = vmax.f32 %v609, %v643
    %v676 = vmax.f32 %v562, %v644
    %v677 = vmax.f32 %v611, %v645
    %v678 = vmax.f32 %v565, %v646
    %v679 = vmax.f32 %v614, %v647
    %v680 = vmax.f32 %v567, %v648
    %v681 = vmax.f32 %v616, %v649
    %v682 = vpack.c.bf16 %v652, %v650
    %v683 = vpack.c.bf16 %v653, %v651
    %v684 = vpack.c.bf16 %v656, %v654
    %v685 = vpack.c.bf16 %v657, %v655
    %v686 = vpack.c.bf16 %v660, %v658
    %v687 = vpack.c.bf16 %v661, %v659
    %v688 = vpack.c.bf16 %v664, %v662
    %v689 = vpack.c.bf16 %v665, %v663
    %v690 = vpack.c.bf16 %v668, %v666
    %v691 = vpack.c.bf16 %v669, %v667
    %v692 = vpack.c.bf16 %v672, %v670
    %v693 = vpack.c.bf16 %v673, %v671
    %v694 = vpack.c.bf16 %v676, %v674
    %v695 = vpack.c.bf16 %v677, %v675
    %v696 = vpack.c.bf16 %v680, %v678
    %v697 = vpack.c.bf16 %v681, %v679
    %v698 = vld [vmem:[#allocation11] sm:$0xff]
    %v699 = vld [vmem:[#allocation11 + $0x8] sm:$0xff]
    %v700 = vld [vmem:[#allocation11 + $0x10] sm:$0xff]
    %v701 = vld [vmem:[#allocation11 + $0x18] sm:$0xff]
    %v702 = vld [vmem:[#allocation11 + $0x20] sm:$0xff]
    %v703 = vld [vmem:[#allocation11 + $0x28] sm:$0xff]
    %v704 = vld [vmem:[#allocation11 + $0x30] sm:$0xff]
    %v705 = vld [vmem:[#allocation11 + $0x38] sm:$0xff]
    %v706 = vld [vmem:[#allocation11 + $0x40] sm:$0xff]
    %v707 = vld [vmem:[#allocation11 + $0x48] sm:$0xff]
    %v708 = vld [vmem:[#allocation11 + $0x50] sm:$0xff]
    %v709 = vld [vmem:[#allocation11 + $0x58] sm:$0xff]
    %v710 = vld [vmem:[#allocation11 + $0x60] sm:$0xff]
    %v711 = vld [vmem:[#allocation11 + $0x68] sm:$0xff]
    %v712 = vld [vmem:[#allocation11 + $0x70] sm:$0xff]
    %v713 = vld [vmem:[#allocation11 + $0x78] sm:$0xff]
    %v714 = vld [vmem:[#allocation11 + $0x80] sm:$0xff]
    %v715 = vld [vmem:[#allocation11 + $0x88] sm:$0xff]
    %v716 = vld [vmem:[#allocation11 + $0x90] sm:$0xff]
    %v717 = vld [vmem:[#allocation11 + $0x98] sm:$0xff]
    %v718 = vld [vmem:[#allocation11 + $0xa0] sm:$0xff]
    %v719 = vld [vmem:[#allocation11 + $0xa8] sm:$0xff]
    %v720 = vld [vmem:[#allocation11 + $0xb0] sm:$0xff]
    %v721 = vld [vmem:[#allocation11 + $0xb8] sm:$0xff]
    %v722 = vld [vmem:[#allocation11 + $0xc0] sm:$0xff]
    %v723 = vld [vmem:[#allocation11 + $0xc8] sm:$0xff]
    %v724 = vld [vmem:[#allocation11 + $0xd0] sm:$0xff]
    %v725 = vld [vmem:[#allocation11 + $0xd8] sm:$0xff]
    %v726 = vld [vmem:[#allocation11 + $0xe0] sm:$0xff]
    %v727 = vld [vmem:[#allocation11 + $0xe8] sm:$0xff]
    %v728 = vld [vmem:[#allocation11 + $0xf0] sm:$0xff]
    %v729 = vld [vmem:[#allocation11 + $0xf8] sm:$0xff]
    %v730 = vld [vmem:[#allocation11 + $0x100] sm:$0xff]
    %v731 = vld [vmem:[#allocation11 + $0x108] sm:$0xff]
    %v732 = vld [vmem:[#allocation11 + $0x110] sm:$0xff]
    %v733 = vld [vmem:[#allocation11 + $0x118] sm:$0xff]
    %v734 = vld [vmem:[#allocation11 + $0x120] sm:$0xff]
    %v735 = vld [vmem:[#allocation11 + $0x128] sm:$0xff]
    %v736 = vld [vmem:[#allocation11 + $0x130] sm:$0xff]
    %v737 = vld [vmem:[#allocation11 + $0x138] sm:$0xff]
    %v738 = vld [vmem:[#allocation11 + $0x140] sm:$0xff]
    %v739 = vld [vmem:[#allocation11 + $0x148] sm:$0xff]
    %v740 = vld [vmem:[#allocation11 + $0x150] sm:$0xff]
    %v741 = vld [vmem:[#allocation11 + $0x158] sm:$0xff]
    %v742 = vld [vmem:[#allocation11 + $0x160] sm:$0xff]
    %v743 = vld [vmem:[#allocation11 + $0x168] sm:$0xff]
    %v744 = vld [vmem:[#allocation11 + $0x170] sm:$0xff]
    %v745 = vld [vmem:[#allocation11 + $0x178] sm:$0xff]
    %v746 = vld [vmem:[#allocation11 + $0x180] sm:$0xff]
    %v747 = vld [vmem:[#allocation11 + $0x188] sm:$0xff]
    %v748 = vld [vmem:[#allocation11 + $0x190] sm:$0xff]
    %v749 = vld [vmem:[#allocation11 + $0x198] sm:$0xff]
    %v750 = vld [vmem:[#allocation11 + $0x1a0] sm:$0xff]
    %v751 = vld [vmem:[#allocation11 + $0x1a8] sm:$0xff]
    %v752 = vld [vmem:[#allocation11 + $0x1b0] sm:$0xff]
    %v753 = vld [vmem:[#allocation11 + $0x1b8] sm:$0xff]
    %v754 = vld [vmem:[#allocation11 + $0x1c0] sm:$0xff]
    %v755 = vld [vmem:[#allocation11 + $0x1c8] sm:$0xff]
    %v756 = vld [vmem:[#allocation11 + $0x1d0] sm:$0xff]
    %v757 = vld [vmem:[#allocation11 + $0x1d8] sm:$0xff]
    %v758 = vld [vmem:[#allocation11 + $0x1e0] sm:$0xff]
    %v759 = vld [vmem:[#allocation11 + $0x1e8] sm:$0xff]
    %v760 = vld [vmem:[#allocation11 + $0x1f0] sm:$0xff]
    %v761 = vld [vmem:[#allocation11 + $0x1f8] sm:$0xff]
    %v762 = vld [vmem:[%s5] sm:$0xf]
    %v764 = vperm.slane %v762, 0
    %v765 = vperm.slane %v762, 1
    %v766 = vperm.slane %v762, 2
    %v767 = vperm.slane %v762, 3
    %v836 = vunpack.c.l.b16 %v698
    %v837 = vunpack.c.h.b16 %v698
    %v838 = vunpack.c.l.b16 %v699
    %v839 = vunpack.c.h.b16 %v699
    %v840 = vunpack.c.l.b16 %v700
    %v841 = vunpack.c.h.b16 %v700
    %v842 = vunpack.c.l.b16 %v701
    %v843 = vunpack.c.h.b16 %v701
    %v844 = vunpack.c.l.b16 %v702
    %v845 = vunpack.c.h.b16 %v702
    %v846 = vunpack.c.l.b16 %v703
    %v847 = vunpack.c.h.b16 %v703
    %v848 = vunpack.c.l.b16 %v704
    %v849 = vunpack.c.h.b16 %v704
    %v850 = vunpack.c.l.b16 %v705
    %v851 = vunpack.c.h.b16 %v705
    %v852 = vunpack.c.l.b16 %v706
    %v853 = vunpack.c.h.b16 %v706
    %v854 = vunpack.c.l.b16 %v707
    %v855 = vunpack.c.h.b16 %v707
    %v856 = vunpack.c.l.b16 %v708
    %v857 = vunpack.c.h.b16 %v708
    %v858 = vunpack.c.l.b16 %v709
    %v859 = vunpack.c.h.b16 %v709
    %v860 = vunpack.c.l.b16 %v710
    %v861 = vunpack.c.h.b16 %v710
    %v862 = vunpack.c.l.b16 %v711
    %v863 = vunpack.c.h.b16 %v711
    %v864 = vunpack.c.l.b16 %v712
    %v865 = vunpack.c.h.b16 %v712
    %v866 = vunpack.c.l.b16 %v713
    %v867 = vunpack.c.h.b16 %v713
    %v868 = vunpack.c.l.b16 %v714
    %v869 = vunpack.c.h.b16 %v714
    %v870 = vunpack.c.l.b16 %v715
    %v871 = vunpack.c.h.b16 %v715
    %v872 = vunpack.c.l.b16 %v716
    %v873 = vunpack.c.h.b16 %v716
    %v874 = vunpack.c.l.b16 %v717
    %v875 = vunpack.c.h.b16 %v717
    %v876 = vunpack.c.l.b16 %v718
    %v877 = vunpack.c.h.b16 %v718
    %v878 = vunpack.c.l.b16 %v719
    %v879 = vunpack.c.h.b16 %v719
    %v880 = vunpack.c.l.b16 %v720
    %v881 = vunpack.c.h.b16 %v720
    %v882 = vunpack.c.l.b16 %v721
    %v883 = vunpack.c.h.b16 %v721
    %v884 = vunpack.c.l.b16 %v722
    %v885 = vunpack.c.h.b16 %v722
    %v886 = vunpack.c.l.b16 %v723
    %v887 = vunpack.c.h.b16 %v723
    %v888 = vunpack.c.l.b16 %v724
    %v889 = vunpack.c.h.b16 %v724
    %v890 = vunpack.c.l.b16 %v725
    %v891 = vunpack.c.h.b16 %v725
    %v892 = vunpack.c.l.b16 %v726
    %v893 = vunpack.c.h.b16 %v726
    %v894 = vunpack.c.l.b16 %v727
    %v895 = vunpack.c.h.b16 %v727
    %v896 = vunpack.c.l.b16 %v728
    %v897 = vunpack.c.h.b16 %v728
    %v898 = vunpack.c.l.b16 %v729
    %v899 = vunpack.c.h.b16 %v729
    %v900 = vunpack.c.l.b16 %v730
    %v901 = vunpack.c.h.b16 %v730
    %v902 = vunpack.c.l.b16 %v731
    %v903 = vunpack.c.h.b16 %v731
    %v904 = vunpack.c.l.b16 %v732
    %v905 = vunpack.c.h.b16 %v732
    %v906 = vunpack.c.l.b16 %v733
    %v907 = vunpack.c.h.b16 %v733
    %v908 = vunpack.c.l.b16 %v734
    %v909 = vunpack.c.h.b16 %v734
    %v910 = vunpack.c.l.b16 %v735
    %v911 = vunpack.c.h.b16 %v735
    %v912 = vunpack.c.l.b16 %v736
    %v913 = vunpack.c.h.b16 %v736
    %v914 = vunpack.c.l.b16 %v737
    %v915 = vunpack.c.h.b16 %v737
    %v916 = vunpack.c.l.b16 %v738
    %v917 = vunpack.c.h.b16 %v738
    %v918 = vunpack.c.l.b16 %v739
    %v919 = vunpack.c.h.b16 %v739
    %v920 = vunpack.c.l.b16 %v740
    %v921 = vunpack.c.h.b16 %v740
    %v922 = vunpack.c.l.b16 %v741
    %v923 = vunpack.c.h.b16 %v741
    %v924 = vunpack.c.l.b16 %v742
    %v925 = vunpack.c.h.b16 %v742
    %v926 = vunpack.c.l.b16 %v743
    %v927 = vunpack.c.h.b16 %v743
    %v928 = vunpack.c.l.b16 %v744
    %v929 = vunpack.c.h.b16 %v744
    %v930 = vunpack.c.l.b16 %v745
    %v931 = vunpack.c.h.b16 %v745
    %v932 = vunpack.c.l.b16 %v746
    %v933 = vunpack.c.h.b16 %v746
    %v934 = vunpack.c.l.b16 %v747
    %v935 = vunpack.c.h.b16 %v747
    %v936 = vunpack.c.l.b16 %v748
    %v937 = vunpack.c.h.b16 %v748
    %v938 = vunpack.c.l.b16 %v749
    %v939 = vunpack.c.h.b16 %v749
    %v940 = vunpack.c.l.b16 %v750
    %v941 = vunpack.c.h.b16 %v750
    %v942 = vunpack.c.l.b16 %v751
    %v943 = vunpack.c.h.b16 %v751
    %v944 = vunpack.c.l.b16 %v752
    %v945 = vunpack.c.h.b16 %v752
    %v946 = vunpack.c.l.b16 %v753
    %v947 = vunpack.c.h.b16 %v753
    %v948 = vunpack.c.l.b16 %v754
    %v949 = vunpack.c.h.b16 %v754
    %v950 = vunpack.c.l.b16 %v755
    %v951 = vunpack.c.h.b16 %v755
    %v952 = vunpack.c.l.b16 %v756
    %v953 = vunpack.c.h.b16 %v756
    %v954 = vunpack.c.l.b16 %v757
    %v955 = vunpack.c.h.b16 %v757
    %v956 = vunpack.c.l.b16 %v758
    %v957 = vunpack.c.h.b16 %v758
    %v958 = vunpack.c.l.b16 %v759
    %v959 = vunpack.c.h.b16 %v759
    %v960 = vunpack.c.l.b16 %v760
    %v961 = vunpack.c.h.b16 %v760
    %v962 = vunpack.c.l.b16 %v761
    %v963 = vunpack.c.h.b16 %v761
    %v964 = vpack.c.b16 %v840, %v836
    %v965 = vpack.c.b16 %v841, %v837
    %v966 = vpack.c.b16 %v842, %v838
    %v967 = vpack.c.b16 %v843, %v839
    %v968 = vpack.c.b16 %v848, %v844
    %v969 = vpack.c.b16 %v849, %v845
    %v970 = vpack.c.b16 %v850, %v846
    %v971 = vpack.c.b16 %v851, %v847
    %v972 = vpack.c.b16 %v856, %v852
    %v973 = vpack.c.b16 %v857, %v853
    %v974 = vpack.c.b16 %v858, %v854
    %v975 = vpack.c.b16 %v859, %v855
    %v976 = vpack.c.b16 %v864, %v860
    %v977 = vpack.c.b16 %v865, %v861
    %v978 = vpack.c.b16 %v866, %v862
    %v979 = vpack.c.b16 %v867, %v863
    %v980 = vpack.c.b16 %v872, %v868
    %v981 = vpack.c.b16 %v873, %v869
    %v982 = vpack.c.b16 %v874, %v870
    %v983 = vpack.c.b16 %v875, %v871
    %v984 = vpack.c.b16 %v880, %v876
    %v985 = vpack.c.b16 %v881, %v877
    %v986 = vpack.c.b16 %v882, %v878
    %v987 = vpack.c.b16 %v883, %v879
    %v988 = vpack.c.b16 %v888, %v884
    %v989 = vpack.c.b16 %v889, %v885
    %v990 = vpack.c.b16 %v890, %v886
    %v991 = vpack.c.b16 %v891, %v887
    %v992 = vpack.c.b16 %v896, %v892
    %v993 = vpack.c.b16 %v897, %v893
    %v994 = vpack.c.b16 %v898, %v894
    %v995 = vpack.c.b16 %v899, %v895
    %v996 = vpack.c.b16 %v904, %v900
    %v997 = vpack.c.b16 %v905, %v901
    %v998 = vpack.c.b16 %v906, %v902
    %v999 = vpack.c.b16 %v907, %v903
    %v1000 = vpack.c.b16 %v912, %v908
    %v1001 = vpack.c.b16 %v913, %v909
    %v1002 = vpack.c.b16 %v914, %v910
    %v1003 = vpack.c.b16 %v915, %v911
    %v1004 = vpack.c.b16 %v920, %v916
    %v1005 = vpack.c.b16 %v921, %v917
    %v1006 = vpack.c.b16 %v922, %v918
    %v1007 = vpack.c.b16 %v923, %v919
    %v1008 = vpack.c.b16 %v928, %v924
    %v1009 = vpack.c.b16 %v929, %v925
    %v1010 = vpack.c.b16 %v930, %v926
    %v1011 = vpack.c.b16 %v931, %v927
    %v1012 = vpack.c.b16 %v936, %v932
    %v1013 = vpack.c.b16 %v937, %v933
    %v1014 = vpack.c.b16 %v938, %v934
    %v1015 = vpack.c.b16 %v939, %v935
    %v1016 = vpack.c.b16 %v944, %v940
    %v1017 = vpack.c.b16 %v945, %v941
    %v1018 = vpack.c.b16 %v946, %v942
    %v1019 = vpack.c.b16 %v947, %v943
    %v1020 = vpack.c.b16 %v952, %v948
    %v1021 = vpack.c.b16 %v953, %v949
    %v1022 = vpack.c.b16 %v954, %v950
    %v1023 = vpack.c.b16 %v955, %v951
    %v1024 = vpack.c.b16 %v960, %v956
    %v1025 = vpack.c.b16 %v961, %v957
    %v1026 = vpack.c.b16 %v962, %v958
    %v1027 = vpack.c.b16 %v963, %v959
    %1092 = vmatpush.bf16.msra.mxu0 %v992
    %1093 = vmatpush.bf16.msra.mxu0 %v988
    %1094 = vmatpush.bf16.msra.mxu0 %v984
    %1095 = vmatpush.bf16.msra.mxu0 %v980
    %1096 = vmatpush.bf16.msra.mxu0 %v976
    %1097 = vmatpush.bf16.msra.mxu0 %v972
    %1098 = vmatpush.bf16.msra.mxu0 %v968
    %1099 = vmatpush.bf16.msra.mxu0 %v964
    %1100 = vmatmul.bf16.gmra.mxu0 %v682
    %v1101 = vpop.f32.mrf.mxu0
    %v1102 = vadd.f32 %v764, %v1101
    %v1103 = vpop.f32.mrf.mxu0
    %v1104 = vadd.f32 %v764, %v1103
    %1105 = vmatmul.bf16.gmra.mxu0 %v684
    %v1106 = vpop.f32.mrf.mxu0
    %v1107 = vadd.f32 %v764, %v1106
    %v1108 = vpop.f32.mrf.mxu0
    %v1109 = vadd.f32 %v764, %v1108
    %1110 = vmatmul.bf16.gmra.mxu0 %v686
    %v1111 = vpop.f32.mrf.mxu0
    %v1112 = vadd.f32 %v764, %v1111
    %v1113 = vpop.f32.mrf.mxu0
    %v1114 = vadd.f32 %v764, %v1113
    %1115 = vmatmul.bf16.gmra.mxu0 %v688
    %v1116 = vpop.f32.mrf.mxu0
    %v1117 = vadd.f32 %v764, %v1116
    %v1118 = vpop.f32.mrf.mxu0
    %v1119 = vadd.f32 %v764, %v1118
    %1120 = vmatmul.bf16.gmra.mxu0 %v690
    %v1121 = vpop.f32.mrf.mxu0
    %v1122 = vadd.f32 %v764, %v1121
    %v1123 = vpop.f32.mrf.mxu0
    %v1124 = vadd.f32 %v764, %v1123
    %1125 = vmatmul.bf16.gmra.mxu0 %v692
    %v1126 = vpop.f32.mrf.mxu0
    %v1127 = vadd.f32 %v764, %v1126
    %v1128 = vpop.f32.mrf.mxu0
    %v1129 = vadd.f32 %v764, %v1128
    %1130 = vmatmul.bf16.gmra.mxu0 %v694
    %v1131 = vpop.f32.mrf.mxu0
    %v1132 = vadd.f32 %v764, %v1131
    %v1133 = vpop.f32.mrf.mxu0
    %v1134 = vadd.f32 %v764, %v1133
    %1135 = vmatmul.bf16.gmra.mxu0 %v696
    %v1136 = vpop.f32.mrf.mxu0
    %v1137 = vadd.f32 %v764, %v1136
    %v1138 = vpop.f32.mrf.mxu0
    %v1139 = vadd.f32 %v764, %v1138
    %1140 = vdwg.mxu0
    %1141 = vmatpush.bf16.msra.mxu0 %v1024
    %1142 = vmatpush.bf16.msra.mxu0 %v1020
    %1143 = vmatpush.bf16.msra.mxu0 %v1016
    %1144 = vmatpush.bf16.msra.mxu0 %v1012
    %1145 = vmatpush.bf16.msra.mxu0 %v1008
    %1146 = vmatpush.bf16.msra.mxu0 %v1004
    %1147 = vmatpush.bf16.msra.mxu0 %v1000
    %1148 = vmatpush.bf16.msra.mxu0 %v996
    %1149 = vmatmul.bf16.gmra.mxu0 %v683
    %v1150 = vpop.f32.mrf.mxu0
    %v1151 = vadd.f32 %v1102, %v1150
    %v1152 = vpop.f32.mrf.mxu0
    %v1153 = vadd.f32 %v1104, %v1152
    %1154 = vmatmul.bf16.gmra.mxu0 %v685
    %v1155 = vpop.f32.mrf.mxu0
    %v1156 = vadd.f32 %v1107, %v1155
    %v1157 = vpop.f32.mrf.mxu0
    %v1158 = vadd.f32 %v1109, %v1157
    %1159 = vmatmul.bf16.gmra.mxu0 %v687
    %v1160 = vpop.f32.mrf.mxu0
    %v1161 = vadd.f32 %v1112, %v1160
    %v1162 = vpop.f32.mrf.mxu0
    %v1163 = vadd.f32 %v1114, %v1162
    %1164 = vmatmul.bf16.gmra.mxu0 %v689
    %v1165 = vpop.f32.mrf.mxu0
    %v1166 = vadd.f32 %v1117, %v1165
    %v1167 = vpop.f32.mrf.mxu0
    %v1168 = vadd.f32 %v1119, %v1167
    %1169 = vmatmul.bf16.gmra.mxu0 %v691
    %v1170 = vpop.f32.mrf.mxu0
    %v1171 = vadd.f32 %v1122, %v1170
    %v1172 = vpop.f32.mrf.mxu0
    %v1173 = vadd.f32 %v1124, %v1172
    %1174 = vmatmul.bf16.gmra.mxu0 %v693
    %v1175 = vpop.f32.mrf.mxu0
    %v1176 = vadd.f32 %v1127, %v1175
    %v1177 = vpop.f32.mrf.mxu0
    %v1178 = vadd.f32 %v1129, %v1177
    %1179 = vmatmul.bf16.gmra.mxu0 %v695
    %v1180 = vpop.f32.mrf.mxu0
    %v1181 = vadd.f32 %v1132, %v1180
    %v1182 = vpop.f32.mrf.mxu0
    %v1183 = vadd.f32 %v1134, %v1182
    %1184 = vmatmul.bf16.gmra.mxu0 %v697
    %v1185 = vpop.f32.mrf.mxu0
    %v1186 = vadd.f32 %v1137, %v1185
    %v1187 = vpop.f32.mrf.mxu0
    %v1188 = vadd.f32 %v1139, %v1187
    %1189 = vdwg.mxu0
    %1190 = vmatpush.bf16.msra.mxu0 %v993
    %1191 = vmatpush.bf16.msra.mxu0 %v989
    %1192 = vmatpush.bf16.msra.mxu0 %v985
    %1193 = vmatpush.bf16.msra.mxu0 %v981
    %1194 = vmatpush.bf16.msra.mxu0 %v977
    %1195 = vmatpush.bf16.msra.mxu0 %v973
    %1196 = vmatpush.bf16.msra.mxu0 %v969
    %1197 = vmatpush.bf16.msra.mxu0 %v965
    %1198 = vmatmul.bf16.gmra.mxu0 %v682
    %v1199 = vpop.f32.mrf.mxu0
    %v1200 = vadd.f32 %v765, %v1199
    %v1201 = vpop.f32.mrf.mxu0
    %v1202 = vadd.f32 %v765, %v1201
    %1203 = vmatmul.bf16.gmra.mxu0 %v684
    %v1204 = vpop.f32.mrf.mxu0
    %v1205 = vadd.f32 %v765, %v1204
    %v1206 = vpop.f32.mrf.mxu0
    %v1207 = vadd.f32 %v765, %v1206
    %1208 = vmatmul.bf16.gmra.mxu0 %v686
    %v1209 = vpop.f32.mrf.mxu0
    %v1210 = vadd.f32 %v765, %v1209
    %v1211 = vpop.f32.mrf.mxu0
    %v1212 = vadd.f32 %v765, %v1211
    %1213 = vmatmul.bf16.gmra.mxu0 %v688
    %v1214 = vpop.f32.mrf.mxu0
    %v1215 = vadd.f32 %v765, %v1214
    %v1216 = vpop.f32.mrf.mxu0
    %v1217 = vadd.f32 %v765, %v1216
    %1218 = vmatmul.bf16.gmra.mxu0 %v690
    %v1219 = vpop.f32.mrf.mxu0
    %v1220 = vadd.f32 %v765, %v1219
    %v1221 = vpop.f32.mrf.mxu0
    %v1222 = vadd.f32 %v765, %v1221
    %1223 = vmatmul.bf16.gmra.mxu0 %v692
    %v1224 = vpop.f32.mrf.mxu0
    %v1225 = vadd.f32 %v765, %v1224
    %v1226 = vpop.f32.mrf.mxu0
    %v1227 = vadd.f32 %v765, %v1226
    %1228 = vmatmul.bf16.gmra.mxu0 %v694
    %v1229 = vpop.f32.mrf.mxu0
    %v1230 = vadd.f32 %v765, %v1229
    %v1231 = vpop.f32.mrf.mxu0
    %v1232 = vadd.f32 %v765, %v1231
    %1233 = vmatmul.bf16.gmra.mxu0 %v696
    %v1234 = vpop.f32.mrf.mxu0
    %v1235 = vadd.f32 %v765, %v1234
    %v1236 = vpop.f32.mrf.mxu0
    %v1237 = vadd.f32 %v765, %v1236
    %1238 = vdwg.mxu0
    %1239 = vmatpush.bf16.msra.mxu0 %v1025
    %1240 = vmatpush.bf16.msra.mxu0 %v1021
    %1241 = vmatpush.bf16.msra.mxu0 %v1017
    %1242 = vmatpush.bf16.msra.mxu0 %v1013
    %1243 = vmatpush.bf16.msra.mxu0 %v1009
    %1244 = vmatpush.bf16.msra.mxu0 %v1005
    %1245 = vmatpush.bf16.msra.mxu0 %v1001
    %1246 = vmatpush.bf16.msra.mxu0 %v997
    %1247 = vmatmul.bf16.gmra.mxu0 %v683
    %v1248 = vpop.f32.mrf.mxu0
    %v1249 = vadd.f32 %v1200, %v1248
    %v1250 = vpop.f32.mrf.mxu0
    %v1251 = vadd.f32 %v1202, %v1250
    %1252 = vmatmul.bf16.gmra.mxu0 %v685
    %v1253 = vpop.f32.mrf.mxu0
    %v1254 = vadd.f32 %v1205, %v1253
    %v1255 = vpop.f32.mrf.mxu0
    %v1256 = vadd.f32 %v1207, %v1255
    %1257 = vmatmul.bf16.gmra.mxu0 %v687
    %v1258 = vpop.f32.mrf.mxu0
    %v1259 = vadd.f32 %v1210, %v1258
    %v1260 = vpop.f32.mrf.mxu0
    %v1261 = vadd.f32 %v1212, %v1260
    %1262 = vmatmul.bf16.gmra.mxu0 %v689
    %v1263 = vpop.f32.mrf.mxu0
    %v1264 = vadd.f32 %v1215, %v1263
    %v1265 = vpop.f32.mrf.mxu0
    %v1266 = vadd.f32 %v1217, %v1265
    %1267 = vmatmul.bf16.gmra.mxu0 %v691
    %v1268 = vpop.f32.mrf.mxu0
    %v1269 = vadd.f32 %v1220, %v1268
    %v1270 = vpop.f32.mrf.mxu0
    %v1271 = vadd.f32 %v1222, %v1270
    %1272 = vmatmul.bf16.gmra.mxu0 %v693
    %v1273 = vpop.f32.mrf.mxu0
    %v1274 = vadd.f32 %v1225, %v1273
    %v1275 = vpop.f32.mrf.mxu0
    %v1276 = vadd.f32 %v1227, %v1275
    %1277 = vmatmul.bf16.gmra.mxu0 %v695
    %v1278 = vpop.f32.mrf.mxu0
    %v1279 = vadd.f32 %v1230, %v1278
    %v1280 = vpop.f32.mrf.mxu0
    %v1281 = vadd.f32 %v1232, %v1280
    %1282 = vmatmul.bf16.gmra.mxu0 %v697
    %v1283 = vpop.f32.mrf.mxu0
    %v1284 = vadd.f32 %v1235, %v1283
    %v1285 = vpop.f32.mrf.mxu0
    %v1286 = vadd.f32 %v1237, %v1285
    %1287 = vdwg.mxu0
    %1288 = vmatpush.bf16.msra.mxu0 %v994
    %1289 = vmatpush.bf16.msra.mxu0 %v990
    %1290 = vmatpush.bf16.msra.mxu0 %v986
    %1291 = vmatpush.bf16.msra.mxu0 %v982
    %1292 = vmatpush.bf16.msra.mxu0 %v978
    %1293 = vmatpush.bf16.msra.mxu0 %v974
    %1294 = vmatpush.bf16.msra.mxu0 %v970
    %1295 = vmatpush.bf16.msra.mxu0 %v966
    %1296 = vmatmul.bf16.gmra.mxu0 %v682
    %v1297 = vpop.f32.mrf.mxu0
    %v1298 = vadd.f32 %v766, %v1297
    %v1299 = vpop.f32.mrf.mxu0
    %v1300 = vadd.f32 %v766, %v1299
    %1301 = vmatmul.bf16.gmra.mxu0 %v684
    %v1302 = vpop.f32.mrf.mxu0
    %v1303 = vadd.f32 %v766, %v1302
    %v1304 = vpop.f32.mrf.mxu0
    %v1305 = vadd.f32 %v766, %v1304
    %1306 = vmatmul.bf16.gmra.mxu0 %v686
    %v1307 = vpop.f32.mrf.mxu0
    %v1308 = vadd.f32 %v766, %v1307
    %v1309 = vpop.f32.mrf.mxu0
    %v1310 = vadd.f32 %v766, %v1309
    %1311 = vmatmul.bf16.gmra.mxu0 %v688
    %v1312 = vpop.f32.mrf.mxu0
    %v1313 = vadd.f32 %v766, %v1312
    %v1314 = vpop.f32.mrf.mxu0
    %v1315 = vadd.f32 %v766, %v1314
    %1316 = vmatmul.bf16.gmra.mxu0 %v690
    %v1317 = vpop.f32.mrf.mxu0
    %v1318 = vadd.f32 %v766, %v1317
    %v1319 = vpop.f32.mrf.mxu0
    %v1320 = vadd.f32 %v766, %v1319
    %1321 = vmatmul.bf16.gmra.mxu0 %v692
    %v1322 = vpop.f32.mrf.mxu0
    %v1323 = vadd.f32 %v766, %v1322
    %v1324 = vpop.f32.mrf.mxu0
    %v1325 = vadd.f32 %v766, %v1324
    %1326 = vmatmul.bf16.gmra.mxu0 %v694
    %v1327 = vpop.f32.mrf.mxu0
    %v1328 = vadd.f32 %v766, %v1327
    %v1329 = vpop.f32.mrf.mxu0
    %v1330 = vadd.f32 %v766, %v1329
    %1331 = vmatmul.bf16.gmra.mxu0 %v696
    %v1332 = vpop.f32.mrf.mxu0
    %v1333 = vadd.f32 %v766, %v1332
    %v1334 = vpop.f32.mrf.mxu0
    %v1335 = vadd.f32 %v766, %v1334
    %1336 = vdwg.mxu0
    %1337 = vmatpush.bf16.msra.mxu0 %v1026
    %1338 = vmatpush.bf16.msra.mxu0 %v1022
    %1339 = vmatpush.bf16.msra.mxu0 %v1018
    %1340 = vmatpush.bf16.msra.mxu0 %v1014
    %1341 = vmatpush.bf16.msra.mxu0 %v1010
    %1342 = vmatpush.bf16.msra.mxu0 %v1006
    %1343 = vmatpush.bf16.msra.mxu0 %v1002
    %1344 = vmatpush.bf16.msra.mxu0 %v998
    %1345 = vmatmul.bf16.gmra.mxu0 %v683
    %v1346 = vpop.f32.mrf.mxu0
    %v1347 = vadd.f32 %v1298, %v1346
    %v1348 = vpop.f32.mrf.mxu0
    %v1349 = vadd.f32 %v1300, %v1348
    %1350 = vmatmul.bf16.gmra.mxu0 %v685
    %v1351 = vpop.f32.mrf.mxu0
    %v1352 = vadd.f32 %v1303, %v1351
    %v1353 = vpop.f32.mrf.mxu0
    %v1354 = vadd.f32 %v1305, %v1353
    %1355 = vmatmul.bf16.gmra.mxu0 %v687
    %v1356 = vpop.f32.mrf.mxu0
    %v1357 = vadd.f32 %v1308, %v1356
    %v1358 = vpop.f32.mrf.mxu0
    %v1359 = vadd.f32 %v1310, %v1358
    %1360 = vmatmul.bf16.gmra.mxu0 %v689
    %v1361 = vpop.f32.mrf.mxu0
    %v1362 = vadd.f32 %v1313, %v1361
    %v1363 = vpop.f32.mrf.mxu0
    %v1364 = vadd.f32 %v1315, %v1363
    %1365 = vmatmul.bf16.gmra.mxu0 %v691
    %v1366 = vpop.f32.mrf.mxu0
    %v1367 = vadd.f32 %v1318, %v1366
    %v1368 = vpop.f32.mrf.mxu0
    %v1369 = vadd.f32 %v1320, %v1368
    %1370 = vmatmul.bf16.gmra.mxu0 %v693
    %v1371 = vpop.f32.mrf.mxu0
    %v1372 = vadd.f32 %v1323, %v1371
    %v1373 = vpop.f32.mrf.mxu0
    %v1374 = vadd.f32 %v1325, %v1373
    %1375 = vmatmul.bf16.gmra.mxu0 %v695
    %v1376 = vpop.f32.mrf.mxu0
    %v1377 = vadd.f32 %v1328, %v1376
    %v1378 = vpop.f32.mrf.mxu0
    %v1379 = vadd.f32 %v1330, %v1378
    %1380 = vmatmul.bf16.gmra.mxu0 %v697
    %v1381 = vpop.f32.mrf.mxu0
    %v1382 = vadd.f32 %v1333, %v1381
    %v1383 = vpop.f32.mrf.mxu0
    %v1384 = vadd.f32 %v1335, %v1383
    %1385 = vdwg.mxu0
    %1386 = vmatpush.bf16.msra.mxu0 %v995
    %1387 = vmatpush.bf16.msra.mxu0 %v991
    %1388 = vmatpush.bf16.msra.mxu0 %v987
    %1389 = vmatpush.bf16.msra.mxu0 %v983
    %1390 = vmatpush.bf16.msra.mxu0 %v979
    %1391 = vmatpush.bf16.msra.mxu0 %v975
    %1392 = vmatpush.bf16.msra.mxu0 %v971
    %1393 = vmatpush.bf16.msra.mxu0 %v967
    %1394 = vmatmul.bf16.gmra.mxu0 %v682
    %v1395 = vpop.f32.mrf.mxu0
    %v1396 = vadd.f32 %v767, %v1395
    %v1397 = vpop.f32.mrf.mxu0
    %v1398 = vadd.f32 %v767, %v1397
    %1399 = vmatmul.bf16.gmra.mxu0 %v684
    %v1400 = vpop.f32.mrf.mxu0
    %v1401 = vadd.f32 %v767, %v1400
    %v1402 = vpop.f32.mrf.mxu0
    %v1403 = vadd.f32 %v767, %v1402
    %1404 = vmatmul.bf16.gmra.mxu0 %v686
    %v1405 = vpop.f32.mrf.mxu0
    %v1406 = vadd.f32 %v767, %v1405
    %v1407 = vpop.f32.mrf.mxu0
    %v1408 = vadd.f32 %v767, %v1407
    %1409 = vmatmul.bf16.gmra.mxu0 %v688
    %v1410 = vpop.f32.mrf.mxu0
    %v1411 = vadd.f32 %v767, %v1410
    %v1412 = vpop.f32.mrf.mxu0
    %v1413 = vadd.f32 %v767, %v1412
    %1414 = vmatmul.bf16.gmra.mxu0 %v690
    %v1415 = vpop.f32.mrf.mxu0
    %v1416 = vadd.f32 %v767, %v1415
    %v1417 = vpop.f32.mrf.mxu0
    %v1418 = vadd.f32 %v767, %v1417
    %1419 = vmatmul.bf16.gmra.mxu0 %v692
    %v1420 = vpop.f32.mrf.mxu0
    %v1421 = vadd.f32 %v767, %v1420
    %v1422 = vpop.f32.mrf.mxu0
    %v1423 = vadd.f32 %v767, %v1422
    %1424 = vmatmul.bf16.gmra.mxu0 %v694
    %v1425 = vpop.f32.mrf.mxu0
    %v1426 = vadd.f32 %v767, %v1425
    %v1427 = vpop.f32.mrf.mxu0
    %v1428 = vadd.f32 %v767, %v1427
    %1429 = vmatmul.bf16.gmra.mxu0 %v696
    %v1430 = vpop.f32.mrf.mxu0
    %v1431 = vadd.f32 %v767, %v1430
    %v1432 = vpop.f32.mrf.mxu0
    %v1433 = vadd.f32 %v767, %v1432
    %1434 = vdwg.mxu0
    %1435 = vmatpush.bf16.msra.mxu0 %v1027
    %1436 = vmatpush.bf16.msra.mxu0 %v1023
    %1437 = vmatpush.bf16.msra.mxu0 %v1019
    %1438 = vmatpush.bf16.msra.mxu0 %v1015
    %1439 = vmatpush.bf16.msra.mxu0 %v1011
    %1440 = vmatpush.bf16.msra.mxu0 %v1007
    %1441 = vmatpush.bf16.msra.mxu0 %v1003
    %1442 = vmatpush.bf16.msra.mxu0 %v999
    %1443 = vmatmul.bf16.gmra.mxu0 %v683
    %v1444 = vpop.f32.mrf.mxu0
    %v1445 = vadd.f32 %v1396, %v1444
    %v1446 = vpop.f32.mrf.mxu0
    %v1447 = vadd.f32 %v1398, %v1446
    %1448 = vmatmul.bf16.gmra.mxu0 %v685
    %v1449 = vpop.f32.mrf.mxu0
    %v1450 = vadd.f32 %v1401, %v1449
    %v1451 = vpop.f32.mrf.mxu0
    %v1452 = vadd.f32 %v1403, %v1451
    %1453 = vmatmul.bf16.gmra.mxu0 %v687
    %v1454 = vpop.f32.mrf.mxu0
    %v1455 = vadd.f32 %v1406, %v1454
    %v1456 = vpop.f32.mrf.mxu0
    %v1457 = vadd.f32 %v1408, %v1456
    %1458 = vmatmul.bf16.gmra.mxu0 %v689
    %v1459 = vpop.f32.mrf.mxu0
    %v1460 = vadd.f32 %v1411, %v1459
    %v1461 = vpop.f32.mrf.mxu0
    %v1462 = vadd.f32 %v1413, %v1461
    %1463 = vmatmul.bf16.gmra.mxu0 %v691
    %v1464 = vpop.f32.mrf.mxu0
    %v1465 = vadd.f32 %v1416, %v1464
    %v1466 = vpop.f32.mrf.mxu0
    %v1467 = vadd.f32 %v1418, %v1466
    %1468 = vmatmul.bf16.gmra.mxu0 %v693
    %v1469 = vpop.f32.mrf.mxu0
    %v1470 = vadd.f32 %v1421, %v1469
    %v1471 = vpop.f32.mrf.mxu0
    %v1472 = vadd.f32 %v1423, %v1471
    %1473 = vmatmul.bf16.gmra.mxu0 %v695
    %v1474 = vpop.f32.mrf.mxu0
    %v1475 = vadd.f32 %v1426, %v1474
    %v1476 = vpop.f32.mrf.mxu0
    %v1477 = vadd.f32 %v1428, %v1476
    %1478 = vmatmul.bf16.gmra.mxu0 %v697
    %v1479 = vpop.f32.mrf.mxu0
    %v1480 = vadd.f32 %v1431, %v1479
    %v1481 = vpop.f32.mrf.mxu0
    %v1482 = vadd.f32 %v1433, %v1481
    %1483 = vdwg.mxu0
    %v1484 = vmul.f32 %v1151, 0.2
    %v1485 = vmul.f32 %v1249, 0.2
    %v1486 = vmul.f32 %v1347, 0.2
    %v1487 = vmul.f32 %v1445, 0.2
    %v1488 = vmul.f32 %v1153, 0.2
    %v1489 = vmul.f32 %v1251, 0.2
    %v1490 = vmul.f32 %v1349, 0.2
    %v1491 = vmul.f32 %v1447, 0.2
    %v1492 = vmul.f32 %v1156, 0.2
    %v1493 = vmul.f32 %v1254, 0.2
    %v1494 = vmul.f32 %v1352, 0.2
    %v1495 = vmul.f32 %v1450, 0.2
    %v1496 = vmul.f32 %v1158, 0.2
    %v1497 = vmul.f32 %v1256, 0.2
    %v1498 = vmul.f32 %v1354, 0.2
    %v1499 = vmul.f32 %v1452, 0.2
    %v1500 = vmul.f32 %v1161, 0.2
    %v1501 = vmul.f32 %v1259, 0.2
    %v1502 = vmul.f32 %v1357, 0.2
    %v1503 = vmul.f32 %v1455, 0.2
    %v1504 = vmul.f32 %v1163, 0.2
    %v1505 = vmul.f32 %v1261, 0.2
    %v1506 = vmul.f32 %v1359, 0.2
    %v1507 = vmul.f32 %v1457, 0.2
    %v1508 = vmul.f32 %v1166, 0.2
    %v1509 = vmul.f32 %v1264, 0.2
    %v1510 = vmul.f32 %v1362, 0.2
    %v1511 = vmul.f32 %v1460, 0.2
    %v1512 = vmul.f32 %v1168, 0.2
    %v1513 = vmul.f32 %v1266, 0.2
    %v1514 = vmul.f32 %v1364, 0.2
    %v1515 = vmul.f32 %v1462, 0.2
    %v1516 = vmul.f32 %v1171, 0.2
    %v1517 = vmul.f32 %v1269, 0.2
    %v1518 = vmul.f32 %v1367, 0.2
    %v1519 = vmul.f32 %v1465, 0.2
    %v1520 = vmul.f32 %v1173, 0.2
    %v1521 = vmul.f32 %v1271, 0.2
    %v1522 = vmul.f32 %v1369, 0.2
    %v1523 = vmul.f32 %v1467, 0.2
    %v1524 = vmul.f32 %v1176, 0.2
    %v1525 = vmul.f32 %v1274, 0.2
    %v1526 = vmul.f32 %v1372, 0.2
    %v1527 = vmul.f32 %v1470, 0.2
    %v1528 = vmul.f32 %v1178, 0.2
    %v1529 = vmul.f32 %v1276, 0.2
    %v1530 = vmul.f32 %v1374, 0.2
    %v1531 = vmul.f32 %v1472, 0.2
    %v1532 = vmul.f32 %v1181, 0.2
    %v1533 = vmul.f32 %v1279, 0.2
    %v1534 = vmul.f32 %v1377, 0.2
    %v1535 = vmul.f32 %v1475, 0.2
    %v1536 = vmul.f32 %v1183, 0.2
    %v1537 = vmul.f32 %v1281, 0.2
    %v1538 = vmul.f32 %v1379, 0.2
    %v1539 = vmul.f32 %v1477, 0.2
    %v1540 = vmul.f32 %v1186, 0.2
    %v1541 = vmul.f32 %v1284, 0.2
    %v1542 = vmul.f32 %v1382, 0.2
    %v1543 = vmul.f32 %v1480, 0.2
    %v1544 = vmul.f32 %v1188, 0.2
    %v1545 = vmul.f32 %v1286, 0.2
    %v1546 = vmul.f32 %v1384, 0.2
    %v1547 = vmul.f32 %v1482, 0.2
    %v1548 = vmax.f32 %v1151, %v1484
    %v1549 = vmax.f32 %v1249, %v1485
    %v1550 = vmax.f32 %v1347, %v1486
    %v1551 = vmax.f32 %v1445, %v1487
    %v1552 = vmax.f32 %v1153, %v1488
    %v1553 = vmax.f32 %v1251, %v1489
    %v1554 = vmax.f32 %v1349, %v1490
    %v1555 = vmax.f32 %v1447, %v1491
    %v1556 = vmax.f32 %v1156, %v1492
    %v1557 = vmax.f32 %v1254, %v1493
    %v1558 = vmax.f32 %v1352, %v1494
    %v1559 = vmax.f32 %v1450, %v1495
    %v1560 = vmax.f32 %v1158, %v1496
    %v1561 = vmax.f32 %v1256, %v1497
    %v1562 = vmax.f32 %v1354, %v1498
    %v1563 = vmax.f32 %v1452, %v1499
    %v1564 = vmax.f32 %v1161, %v1500
    %v1565 = vmax.f32 %v1259, %v1501
    %v1566 = vmax.f32 %v1357, %v1502
    %v1567 = vmax.f32 %v1455, %v1503
    %v1568 = vmax.f32 %v1163, %v1504
    %v1569 = vmax.f32 %v1261, %v1505
    %v1570 = vmax.f32 %v1359, %v1506
    %v1571 = vmax.f32 %v1457, %v1507
    %v1572 = vmax.f32 %v1166, %v1508
    %v1573 = vmax.f32 %v1264, %v1509
    %v1574 = vmax.f32 %v1362, %v1510
    %v1575 = vmax.f32 %v1460, %v1511
    %v1576 = vmax.f32 %v1168, %v1512
    %v1577 = vmax.f32 %v1266, %v1513
    %v1578 = vmax.f32 %v1364, %v1514
    %v1579 = vmax.f32 %v1462, %v1515
    %v1580 = vmax.f32 %v1171, %v1516
    %v1581 = vmax.f32 %v1269, %v1517
    %v1582 = vmax.f32 %v1367, %v1518
    %v1583 = vmax.f32 %v1465, %v1519
    %v1584 = vmax.f32 %v1173, %v1520
    %v1585 = vmax.f32 %v1271, %v1521
    %v1586 = vmax.f32 %v1369, %v1522
    %v1587 = vmax.f32 %v1467, %v1523
    %v1588 = vmax.f32 %v1176, %v1524
    %v1589 = vmax.f32 %v1274, %v1525
    %v1590 = vmax.f32 %v1372, %v1526
    %v1591 = vmax.f32 %v1470, %v1527
    %v1592 = vmax.f32 %v1178, %v1528
    %v1593 = vmax.f32 %v1276, %v1529
    %v1594 = vmax.f32 %v1374, %v1530
    %v1595 = vmax.f32 %v1472, %v1531
    %v1596 = vmax.f32 %v1181, %v1532
    %v1597 = vmax.f32 %v1279, %v1533
    %v1598 = vmax.f32 %v1377, %v1534
    %v1599 = vmax.f32 %v1475, %v1535
    %v1600 = vmax.f32 %v1183, %v1536
    %v1601 = vmax.f32 %v1281, %v1537
    %v1602 = vmax.f32 %v1379, %v1538
    %v1603 = vmax.f32 %v1477, %v1539
    %v1604 = vmax.f32 %v1186, %v1540
    %v1605 = vmax.f32 %v1284, %v1541
    %v1606 = vmax.f32 %v1382, %v1542
    %v1607 = vmax.f32 %v1480, %v1543
    %v1608 = vmax.f32 %v1188, %v1544
    %v1609 = vmax.f32 %v1286, %v1545
    %v1610 = vmax.f32 %v1384, %v1546
    %v1611 = vmax.f32 %v1482, %v1547
    %v1612 = vpack.c.bf16 %v1552, %v1548
    %v1613 = vpack.c.bf16 %v1553, %v1549
    %v1614 = vpack.c.bf16 %v1554, %v1550
    %v1615 = vpack.c.bf16 %v1555, %v1551
    %v1616 = vpack.c.bf16 %v1560, %v1556
    %v1617 = vpack.c.bf16 %v1561, %v1557
    %v1618 = vpack.c.bf16 %v1562, %v1558
    %v1619 = vpack.c.bf16 %v1563, %v1559
    %v1620 = vpack.c.bf16 %v1568, %v1564
    %v1621 = vpack.c.bf16 %v1569, %v1565
    %v1622 = vpack.c.bf16 %v1570, %v1566
    %v1623 = vpack.c.bf16 %v1571, %v1567
    %v1624 = vpack.c.bf16 %v1576, %v1572
    %v1625 = vpack.c.bf16 %v1577, %v1573
    %v1626 = vpack.c.bf16 %v1578, %v1574
    %v1627 = vpack.c.bf16 %v1579, %v1575
    %v1628 = vpack.c.bf16 %v1584, %v1580
    %v1629 = vpack.c.bf16 %v1585, %v1581
    %v1630 = vpack.c.bf16 %v1586, %v1582
    %v1631 = vpack.c.bf16 %v1587, %v1583
    %v1632 = vpack.c.bf16 %v1592, %v1588
    %v1633 = vpack.c.bf16 %v1593, %v1589
    %v1634 = vpack.c.bf16 %v1594, %v1590
    %v1635 = vpack.c.bf16 %v1595, %v1591
    %v1636 = vpack.c.bf16 %v1600, %v1596
    %v1637 = vpack.c.bf16 %v1601, %v1597
    %v1638 = vpack.c.bf16 %v1602, %v1598
    %v1639 = vpack.c.bf16 %v1603, %v1599
    %v1640 = vpack.c.bf16 %v1608, %v1604
    %v1641 = vpack.c.bf16 %v1609, %v1605
    %v1642 = vpack.c.bf16 %v1610, %v1606
    %v1643 = vpack.c.bf16 %v1611, %v1607
    %v1644 = vld [vmem:[#allocation12] sm:$0xf]
    %v1645 = vld [vmem:[#allocation12 + $0x4] sm:$0xf]
    %v1646 = vld [vmem:[#allocation12 + $0x8] sm:$0xf]
    %v1647 = vld [vmem:[#allocation12 + $0xc] sm:$0xf]
    %v1648 = vld [vmem:[#allocation12 + $0x10] sm:$0xf]
    %v1649 = vld [vmem:[#allocation12 + $0x14] sm:$0xf]
    %v1650 = vld [vmem:[#allocation12 + $0x18] sm:$0xf]
    %v1651 = vld [vmem:[#allocation12 + $0x1c] sm:$0xf]
    %v1652 = vld [vmem:[#allocation12 + $0x20] sm:$0xf]
    %v1653 = vld [vmem:[#allocation12 + $0x24] sm:$0xf]
    %v1654 = vld [vmem:[#allocation12 + $0x28] sm:$0xf]
    %v1655 = vld [vmem:[#allocation12 + $0x2c] sm:$0xf]
    %v1656 = vld [vmem:[#allocation12 + $0x30] sm:$0xf]
    %v1657 = vld [vmem:[#allocation12 + $0x34] sm:$0xf]
    %v1658 = vld [vmem:[#allocation12 + $0x38] sm:$0xf]
    %v1659 = vld [vmem:[#allocation12 + $0x3c] sm:$0xf]
    %v1660 = vld [vmem:[#allocation12 + $0x40] sm:$0xf]
    %v1661 = vld [vmem:[#allocation12 + $0x44] sm:$0xf]
    %v1662 = vld [vmem:[#allocation12 + $0x48] sm:$0xf]
    %v1663 = vld [vmem:[#allocation12 + $0x4c] sm:$0xf]
    %v1664 = vld [vmem:[#allocation12 + $0x50] sm:$0xf]
    %v1665 = vld [vmem:[#allocation12 + $0x54] sm:$0xf]
    %v1666 = vld [vmem:[#allocation12 + $0x58] sm:$0xf]
    %v1667 = vld [vmem:[#allocation12 + $0x5c] sm:$0xf]
    %v1668 = vld [vmem:[#allocation12 + $0x60] sm:$0xf]
    %v1669 = vld [vmem:[#allocation12 + $0x64] sm:$0xf]
    %v1670 = vld [vmem:[#allocation12 + $0x68] sm:$0xf]
    %v1671 = vld [vmem:[#allocation12 + $0x6c] sm:$0xf]
    %v1672 = vld [vmem:[#allocation12 + $0x70] sm:$0xf]
    %v1673 = vld [vmem:[#allocation12 + $0x74] sm:$0xf]
    %v1674 = vld [vmem:[#allocation12 + $0x78] sm:$0xf]
    %v1675 = vld [vmem:[#allocation12 + $0x7c] sm:$0xf]
    %v1676 = vld [vmem:[#allocation12 + $0x80] sm:$0xf]
    %v1677 = vld [vmem:[#allocation12 + $0x84] sm:$0xf]
    %v1678 = vld [vmem:[#allocation12 + $0x88] sm:$0xf]
    %v1679 = vld [vmem:[#allocation12 + $0x8c] sm:$0xf]
    %v1680 = vld [vmem:[#allocation12 + $0x90] sm:$0xf]
    %v1681 = vld [vmem:[#allocation12 + $0x94] sm:$0xf]
    %v1682 = vld [vmem:[#allocation12 + $0x98] sm:$0xf]
    %v1683 = vld [vmem:[#allocation12 + $0x9c] sm:$0xf]
    %v1684 = vld [vmem:[#allocation12 + $0xa0] sm:$0xf]
    %v1685 = vld [vmem:[#allocation12 + $0xa4] sm:$0xf]
    %v1686 = vld [vmem:[#allocation12 + $0xa8] sm:$0xf]
    %v1687 = vld [vmem:[#allocation12 + $0xac] sm:$0xf]
    %v1688 = vld [vmem:[#allocation12 + $0xb0] sm:$0xf]
    %v1689 = vld [vmem:[#allocation12 + $0xb4] sm:$0xf]
    %v1690 = vld [vmem:[#allocation12 + $0xb8] sm:$0xf]
    %v1691 = vld [vmem:[#allocation12 + $0xbc] sm:$0xf]
    %v1692 = vld [vmem:[#allocation12 + $0xc0] sm:$0xf]
    %v1693 = vld [vmem:[#allocation12 + $0xc4] sm:$0xf]
    %v1694 = vld [vmem:[#allocation12 + $0xc8] sm:$0xf]
    %v1695 = vld [vmem:[#allocation12 + $0xcc] sm:$0xf]
    %v1696 = vld [vmem:[#allocation12 + $0xd0] sm:$0xf]
    %v1697 = vld [vmem:[#allocation12 + $0xd4] sm:$0xf]
    %v1698 = vld [vmem:[#allocation12 + $0xd8] sm:$0xf]
    %v1699 = vld [vmem:[#allocation12 + $0xdc] sm:$0xf]
    %v1700 = vld [vmem:[#allocation12 + $0xe0] sm:$0xf]
    %v1701 = vld [vmem:[#allocation12 + $0xe4] sm:$0xf]
    %v1702 = vld [vmem:[#allocation12 + $0xe8] sm:$0xf]
    %v1703 = vld [vmem:[#allocation12 + $0xec] sm:$0xf]
    %v1704 = vld [vmem:[#allocation12 + $0xf0] sm:$0xf]
    %v1705 = vld [vmem:[#allocation12 + $0xf4] sm:$0xf]
    %v1706 = vld [vmem:[#allocation12 + $0xf8] sm:$0xf]
    %v1707 = vld [vmem:[#allocation12 + $0xfc] sm:$0xf]
    %v1708 = vld [vmem:[%s7] sm:$0x1]
    %v1710 = vperm.slane %v1708, 0
    %v1776 = vunpack.c.l.b16 %v1644
    %v1777 = vunpack.c.l.b16 %v1645
    %v1778 = vunpack.c.l.b16 %v1646
    %v1779 = vunpack.c.l.b16 %v1647
    %v1780 = vunpack.c.l.b16 %v1648
    %v1781 = vunpack.c.l.b16 %v1649
    %v1782 = vunpack.c.l.b16 %v1650
    %v1783 = vunpack.c.l.b16 %v1651
    %v1784 = vunpack.c.l.b16 %v1652
    %v1785 = vunpack.c.l.b16 %v1653
    %v1786 = vunpack.c.l.b16 %v1654
    %v1787 = vunpack.c.l.b16 %v1655
    %v1788 = vunpack.c.l.b16 %v1656
    %v1789 = vunpack.c.l.b16 %v1657
    %v1790 = vunpack.c.l.b16 %v1658
    %v1791 = vunpack.c.l.b16 %v1659
    %v1792 = vunpack.c.l.b16 %v1660
    %v1793 = vunpack.c.l.b16 %v1661
    %v1794 = vunpack.c.l.b16 %v1662
    %v1795 = vunpack.c.l.b16 %v1663
    %v1796 = vunpack.c.l.b16 %v1664
    %v1797 = vunpack.c.l.b16 %v1665
    %v1798 = vunpack.c.l.b16 %v1666
    %v1799 = vunpack.c.l.b16 %v1667
    %v1800 = vunpack.c.l.b16 %v1668
    %v1801 = vunpack.c.l.b16 %v1669
    %v1802 = vunpack.c.l.b16 %v1670
    %v1803 = vunpack.c.l.b16 %v1671
    %v1804 = vunpack.c.l.b16 %v1672
    %v1805 = vunpack.c.l.b16 %v1673
    %v1806 = vunpack.c.l.b16 %v1674
    %v1807 = vunpack.c.l.b16 %v1675
    %v1808 = vunpack.c.l.b16 %v1676
    %v1809 = vunpack.c.l.b16 %v1677
    %v1810 = vunpack.c.l.b16 %v1678
    %v1811 = vunpack.c.l.b16 %v1679
    %v1812 = vunpack.c.l.b16 %v1680
    %v1813 = vunpack.c.l.b16 %v1681
    %v1814 = vunpack.c.l.b16 %v1682
    %v1815 = vunpack.c.l.b16 %v1683
    %v1816 = vunpack.c.l.b16 %v1684
    %v1817 = vunpack.c.l.b16 %v1685
    %v1818 = vunpack.c.l.b16 %v1686
    %v1819 = vunpack.c.l.b16 %v1687
    %v1820 = vunpack.c.l.b16 %v1688
    %v1821 = vunpack.c.l.b16 %v1689
    %v1822 = vunpack.c.l.b16 %v1690
    %v1823 = vunpack.c.l.b16 %v1691
    %v1824 = vunpack.c.l.b16 %v1692
    %v1825 = vunpack.c.l.b16 %v1693
    %v1826 = vunpack.c.l.b16 %v1694
    %v1827 = vunpack.c.l.b16 %v1695
    %v1828 = vunpack.c.l.b16 %v1696
    %v1829 = vunpack.c.l.b16 %v1697
    %v1830 = vunpack.c.l.b16 %v1698
    %v1831 = vunpack.c.l.b16 %v1699
    %v1832 = vunpack.c.l.b16 %v1700
    %v1833 = vunpack.c.l.b16 %v1701
    %v1834 = vunpack.c.l.b16 %v1702
    %v1835 = vunpack.c.l.b16 %v1703
    %v1836 = vunpack.c.l.b16 %v1704
    %v1837 = vunpack.c.l.b16 %v1705
    %v1838 = vunpack.c.l.b16 %v1706
    %v1839 = vunpack.c.l.b16 %v1707
    %v1840 = vpack.c.b16 %v1777, %v1776
    %v1841 = vpack.c.b16 %v1779, %v1778
    %v1842 = vpack.c.b16 %v1781, %v1780
    %v1843 = vpack.c.b16 %v1783, %v1782
    %v1844 = vpack.c.b16 %v1785, %v1784
    %v1845 = vpack.c.b16 %v1787, %v1786
    %v1846 = vpack.c.b16 %v1789, %v1788
    %v1847 = vpack.c.b16 %v1791, %v1790
    %v1848 = vpack.c.b16 %v1793, %v1792
    %v1849 = vpack.c.b16 %v1795, %v1794
    %v1850 = vpack.c.b16 %v1797, %v1796
    %v1851 = vpack.c.b16 %v1799, %v1798
    %v1852 = vpack.c.b16 %v1801, %v1800
    %v1853 = vpack.c.b16 %v1803, %v1802
    %v1854 = vpack.c.b16 %v1805, %v1804
    %v1855 = vpack.c.b16 %v1807, %v1806
    %v1856 = vpack.c.b16 %v1809, %v1808
    %v1857 = vpack.c.b16 %v1811, %v1810
    %v1858 = vpack.c.b16 %v1813, %v1812
    %v1859 = vpack.c.b16 %v1815, %v1814
    %v1860 = vpack.c.b16 %v1817, %v1816
    %v1861 = vpack.c.b16 %v1819, %v1818
    %v1862 = vpack.c.b16 %v1821, %v1820
    %v1863 = vpack.c.b16 %v1823, %v1822
    %v1864 = vpack.c.b16 %v1825, %v1824
    %v1865 = vpack.c.b16 %v1827, %v1826
    %v1866 = vpack.c.b16 %v1829, %v1828
    %v1867 = vpack.c.b16 %v1831, %v1830
    %v1868 = vpack.c.b16 %v1833, %v1832
    %v1869 = vpack.c.b16 %v1835, %v1834
    %v1870 = vpack.c.b16 %v1837, %v1836
    %v1871 = vpack.c.b16 %v1839, %v1838
    %1904 = vmatpush.bf16.msra.mxu0 %v1847
    %1905 = vmatpush.bf16.msra.mxu0 %v1846
    %1906 = vmatpush.bf16.msra.mxu0 %v1845
    %1907 = vmatpush.bf16.msra.mxu0 %v1844
    %1908 = vmatpush.bf16.msra.mxu0 %v1843
    %1909 = vmatpush.bf16.msra.mxu0 %v1842
    %1910 = vmatpush.bf16.msra.mxu0 %v1841
    %1911 = vmatpush.bf16.msra.mxu0 %v1840
    %1912 = vmatmul.bf16.gmra.mxu0 %v1612
    %v1913 = vpop.f32.mrf.mxu0
    %v1914 = vadd.f32 %v1710, %v1913
    %v1915 = vpop.f32.mrf.mxu0
    %v1916 = vadd.f32 %v1710, %v1915
    %1917 = vmatmul.bf16.gmra.mxu0 %v1616
    %v1918 = vpop.f32.mrf.mxu0
    %v1919 = vadd.f32 %v1710, %v1918
    %v1920 = vpop.f32.mrf.mxu0
    %v1921 = vadd.f32 %v1710, %v1920
    %1922 = vmatmul.bf16.gmra.mxu0 %v1620
    %v1923 = vpop.f32.mrf.mxu0
    %v1924 = vadd.f32 %v1710, %v1923
    %v1925 = vpop.f32.mrf.mxu0
    %v1926 = vadd.f32 %v1710, %v1925
    %1927 = vmatmul.bf16.gmra.mxu0 %v1624
    %v1928 = vpop.f32.mrf.mxu0
    %v1929 = vadd.f32 %v1710, %v1928
    %v1930 = vpop.f32.mrf.mxu0
    %v1931 = vadd.f32 %v1710, %v1930
    %1932 = vmatmul.bf16.gmra.mxu0 %v1628
    %v1933 = vpop.f32.mrf.mxu0
    %v1934 = vadd.f32 %v1710, %v1933
    %v1935 = vpop.f32.mrf.mxu0
    %v1936 = vadd.f32 %v1710, %v1935
    %1937 = vmatmul.bf16.gmra.mxu0 %v1632
    %v1938 = vpop.f32.mrf.mxu0
    %v1939 = vadd.f32 %v1710, %v1938
    %v1940 = vpop.f32.mrf.mxu0
    %v1941 = vadd.f32 %v1710, %v1940
    %1942 = vmatmul.bf16.gmra.mxu0 %v1636
    %v1943 = vpop.f32.mrf.mxu0
    %v1944 = vadd.f32 %v1710, %v1943
    %v1945 = vpop.f32.mrf.mxu0
    %v1946 = vadd.f32 %v1710, %v1945
    %1947 = vmatmul.bf16.gmra.mxu0 %v1640
    %v1948 = vpop.f32.mrf.mxu0
    %v1949 = vadd.f32 %v1710, %v1948
    %v1950 = vpop.f32.mrf.mxu0
    %v1951 = vadd.f32 %v1710, %v1950
    %1952 = vdwg.mxu0
    %1953 = vmatpush.bf16.msra.mxu0 %v1855
    %1954 = vmatpush.bf16.msra.mxu0 %v1854
    %1955 = vmatpush.bf16.msra.mxu0 %v1853
    %1956 = vmatpush.bf16.msra.mxu0 %v1852
    %1957 = vmatpush.bf16.msra.mxu0 %v1851
    %1958 = vmatpush.bf16.msra.mxu0 %v1850
    %1959 = vmatpush.bf16.msra.mxu0 %v1849
    %1960 = vmatpush.bf16.msra.mxu0 %v1848
    %1961 = vmatmul.bf16.gmra.mxu0 %v1613
    %v1962 = vpop.f32.mrf.mxu0
    %v1963 = vadd.f32 %v1914, %v1962
    %v1964 = vpop.f32.mrf.mxu0
    %v1965 = vadd.f32 %v1916, %v1964
    %1966 = vmatmul.bf16.gmra.mxu0 %v1617
    %v1967 = vpop.f32.mrf.mxu0
    %v1968 = vadd.f32 %v1919, %v1967
    %v1969 = vpop.f32.mrf.mxu0
    %v1970 = vadd.f32 %v1921, %v1969
    %1971 = vmatmul.bf16.gmra.mxu0 %v1621
    %v1972 = vpop.f32.mrf.mxu0
    %v1973 = vadd.f32 %v1924, %v1972
    %v1974 = vpop.f32.mrf.mxu0
    %v1975 = vadd.f32 %v1926, %v1974
    %1976 = vmatmul.bf16.gmra.mxu0 %v1625
    %v1977 = vpop.f32.mrf.mxu0
    %v1978 = vadd.f32 %v1929, %v1977
    %v1979 = vpop.f32.mrf.mxu0
    %v1980 = vadd.f32 %v1931, %v1979
    %1981 = vmatmul.bf16.gmra.mxu0 %v1629
    %v1982 = vpop.f32.mrf.mxu0
    %v1983 = vadd.f32 %v1934, %v1982
    %v1984 = vpop.f32.mrf.mxu0
    %v1985 = vadd.f32 %v1936, %v1984
    %1986 = vmatmul.bf16.gmra.mxu0 %v1633
    %v1987 = vpop.f32.mrf.mxu0
    %v1988 = vadd.f32 %v1939, %v1987
    %v1989 = vpop.f32.mrf.mxu0
    %v1990 = vadd.f32 %v1941, %v1989
    %1991 = vmatmul.bf16.gmra.mxu0 %v1637
    %v1992 = vpop.f32.mrf.mxu0
    %v1993 = vadd.f32 %v1944, %v1992
    %v1994 = vpop.f32.mrf.mxu0
    %v1995 = vadd.f32 %v1946, %v1994
    %1996 = vmatmul.bf16.gmra.mxu0 %v1641
    %v1997 = vpop.f32.mrf.mxu0
    %v1998 = vadd.f32 %v1949, %v1997
    %v1999 = vpop.f32.mrf.mxu0
    %v2000 = vadd.f32 %v1951, %v1999
    %2001 = vdwg.mxu0
    %2002 = vmatpush.bf16.msra.mxu0 %v1863
    %2003 = vmatpush.bf16.msra.mxu0 %v1862
    %2004 = vmatpush.bf16.msra.mxu0 %v1861
    %2005 = vmatpush.bf16.msra.mxu0 %v1860
    %2006 = vmatpush.bf16.msra.mxu0 %v1859
    %2007 = vmatpush.bf16.msra.mxu0 %v1858
    %2008 = vmatpush.bf16.msra.mxu0 %v1857
    %2009 = vmatpush.bf16.msra.mxu0 %v1856
    %2010 = vmatmul.bf16.gmra.mxu0 %v1614
    %v2011 = vpop.f32.mrf.mxu0
    %v2012 = vadd.f32 %v1963, %v2011
    %v2013 = vpop.f32.mrf.mxu0
    %v2014 = vadd.f32 %v1965, %v2013
    %2015 = vmatmul.bf16.gmra.mxu0 %v1618
    %v2016 = vpop.f32.mrf.mxu0
    %v2017 = vadd.f32 %v1968, %v2016
    %v2018 = vpop.f32.mrf.mxu0
    %v2019 = vadd.f32 %v1970, %v2018
    %2020 = vmatmul.bf16.gmra.mxu0 %v1622
    %v2021 = vpop.f32.mrf.mxu0
    %v2022 = vadd.f32 %v1973, %v2021
    %v2023 = vpop.f32.mrf.mxu0
    %v2024 = vadd.f32 %v1975, %v2023
    %2025 = vmatmul.bf16.gmra.mxu0 %v1626
    %v2026 = vpop.f32.mrf.mxu0
    %v2027 = vadd.f32 %v1978, %v2026
    %v2028 = vpop.f32.mrf.mxu0
    %v2029 = vadd.f32 %v1980, %v2028
    %2030 = vmatmul.bf16.gmra.mxu0 %v1630
    %v2031 = vpop.f32.mrf.mxu0
    %v2032 = vadd.f32 %v1983, %v2031
    %v2033 = vpop.f32.mrf.mxu0
    %v2034 = vadd.f32 %v1985, %v2033
    %2035 = vmatmul.bf16.gmra.mxu0 %v1634
    %v2036 = vpop.f32.mrf.mxu0
    %v2037 = vadd.f32 %v1988, %v2036
    %v2038 = vpop.f32.mrf.mxu0
    %v2039 = vadd.f32 %v1990, %v2038
    %2040 = vmatmul.bf16.gmra.mxu0 %v1638
    %v2041 = vpop.f32.mrf.mxu0
    %v2042 = vadd.f32 %v1993, %v2041
    %v2043 = vpop.f32.mrf.mxu0
    %v2044 = vadd.f32 %v1995, %v2043
    %2045 = vmatmul.bf16.gmra.mxu0 %v1642
    %v2046 = vpop.f32.mrf.mxu0
    %v2047 = vadd.f32 %v1998, %v2046
    %v2048 = vpop.f32.mrf.mxu0
    %v2049 = vadd.f32 %v2000, %v2048
    %2050 = vdwg.mxu0
    %2051 = vmatpush.bf16.msra.mxu0 %v1871
    %2052 = vmatpush.bf16.msra.mxu0 %v1870
    %2053 = vmatpush.bf16.msra.mxu0 %v1869
    %2054 = vmatpush.bf16.msra.mxu0 %v1868
    %2055 = vmatpush.bf16.msra.mxu0 %v1867
    %2056 = vmatpush.bf16.msra.mxu0 %v1866
    %2057 = vmatpush.bf16.msra.mxu0 %v1865
    %2058 = vmatpush.bf16.msra.mxu0 %v1864
    %2059 = vmatmul.bf16.gmra.mxu0 %v1615
    %v2060 = vpop.f32.mrf.mxu0
    %v2061 = vadd.f32 %v2012, %v2060
    %v2062 = vpop.f32.mrf.mxu0
    %v2063 = vadd.f32 %v2014, %v2062
    %2064 = vmatmul.bf16.gmra.mxu0 %v1619
    %v2065 = vpop.f32.mrf.mxu0
    %v2066 = vadd.f32 %v2017, %v2065
    %v2067 = vpop.f32.mrf.mxu0
    %v2068 = vadd.f32 %v2019, %v2067
    %2069 = vmatmul.bf16.gmra.mxu0 %v1623
    %v2070 = vpop.f32.mrf.mxu0
    %v2071 = vadd.f32 %v2022, %v2070
    %v2072 = vpop.f32.mrf.mxu0
    %v2073 = vadd.f32 %v2024, %v2072
    %2074 = vmatmul.bf16.gmra.mxu0 %v1627
    %v2075 = vpop.f32.mrf.mxu0
    %v2076 = vadd.f32 %v2027, %v2075
    %v2077 = vpop.f32.mrf.mxu0
    %v2078 = vadd.f32 %v2029, %v2077
    %2079 = vmatmul.bf16.gmra.mxu0 %v1631
    %v2080 = vpop.f32.mrf.mxu0
    %v2081 = vadd.f32 %v2032, %v2080
    %v2082 = vpop.f32.mrf.mxu0
    %v2083 = vadd.f32 %v2034, %v2082
    %2084 = vmatmul.bf16.gmra.mxu0 %v1635
    %v2085 = vpop.f32.mrf.mxu0
    %v2086 = vadd.f32 %v2037, %v2085
    %v2087 = vpop.f32.mrf.mxu0
    %v2088 = vadd.f32 %v2039, %v2087
    %2089 = vmatmul.bf16.gmra.mxu0 %v1639
    %v2090 = vpop.f32.mrf.mxu0
    %v2091 = vadd.f32 %v2042, %v2090
    %v2092 = vpop.f32.mrf.mxu0
    %v2093 = vadd.f32 %v2044, %v2092
    %2094 = vmatmul.bf16.gmra.mxu0 %v1643
    %v2095 = vpop.f32.mrf.mxu0
    %v2096 = vadd.f32 %v2047, %v2095
    %v2097 = vpop.f32.mrf.mxu0
    %v2098 = vadd.f32 %v2049, %v2097
    %2099 = vdwg.mxu0
    %v2100 = vtanh.pop %v2061
    %v2101 = vtanh.pop %v2063
    %v2102 = vtanh.pop %v2066
    %v2103 = vtanh.pop %v2068
    %v2104 = vtanh.pop %v2071
    %v2105 = vtanh.pop %v2073
    %v2106 = vtanh.pop %v2076
    %v2107 = vtanh.pop %v2078
    %v2108 = vtanh.pop %v2081
    %v2109 = vtanh.pop %v2083
    %v2110 = vtanh.pop %v2086
    %v2111 = vtanh.pop %v2088
    %v2112 = vtanh.pop %v2091
    %v2113 = vtanh.pop %v2093
    %v2114 = vtanh.pop %v2096
    %v2115 = vtanh.pop %v2098
    %v2116 = vpack.c.bf16 %v2100, %v2100
    %v2117 = vpack.c.bf16 %v2101, %v2101
    %v2118 = vpack.c.bf16 %v2102, %v2102
    %v2119 = vpack.c.bf16 %v2103, %v2103
    %v2120 = vpack.c.bf16 %v2104, %v2104
    %v2121 = vpack.c.bf16 %v2105, %v2105
    %v2122 = vpack.c.bf16 %v2106, %v2106
    %v2123 = vpack.c.bf16 %v2107, %v2107
    %v2124 = vpack.c.bf16 %v2108, %v2108
    %v2125 = vpack.c.bf16 %v2109, %v2109
    %v2126 = vpack.c.bf16 %v2110, %v2110
    %v2127 = vpack.c.bf16 %v2111, %v2111
    %v2128 = vpack.c.bf16 %v2112, %v2112
    %v2129 = vpack.c.bf16 %v2113, %v2113
    %v2130 = vpack.c.bf16 %v2114, %v2114
    %v2131 = vpack.c.bf16 %v2115, %v2115
    %2132 = vst [vmem:[%s10] sm:$0xf] %v2116
    %2133 = vst [vmem:[%s10 + $0x4] sm:$0xf] %v2117
    %2134 = vst [vmem:[%s10 + $0x8] sm:$0xf] %v2118
    %2135 = vst [vmem:[%s10 + $0xc] sm:$0xf] %v2119
    %2136 = vst [vmem:[%s10 + $0x10] sm:$0xf] %v2120
    %2137 = vst [vmem:[%s10 + $0x14] sm:$0xf] %v2121
    %2138 = vst [vmem:[%s10 + $0x18] sm:$0xf] %v2122
    %2139 = vst [vmem:[%s10 + $0x1c] sm:$0xf] %v2123
    %2140 = vst [vmem:[%s10 + $0x20] sm:$0xf] %v2124
    %2141 = vst [vmem:[%s10 + $0x24] sm:$0xf] %v2125
    %2142 = vst [vmem:[%s10 + $0x28] sm:$0xf] %v2126
    %2143 = vst [vmem:[%s10 + $0x2c] sm:$0xf] %v2127
    %2144 = vst [vmem:[%s10 + $0x30] sm:$0xf] %v2128
    %2145 = vst [vmem:[%s10 + $0x34] sm:$0xf] %v2129
    %2146 = vst [vmem:[%s10 + $0x38] sm:$0xf] %v2130
    %2147 = vst [vmem:[%s10 + $0x3c] sm:$0xf] %v2131
    // Predicated region
    $region54: #{generator_forward.2} parent=1 // pred_check
      _
    $region55: #{generator_forward.2} parent=1 // pred_check_branch
      %2149 = sbr.rel (0) target = $region57
    $region56: #{generator_forward.2} parent=1 // pred_region
      _
    $region57: #{generator_forward.2} parent=1 // pred_fallthru
      _
    // Predicated region
    $region58: #{generator_forward.2} parent=1 // pred_check
      _
    $region59: #{generator_forward.2} parent=1 // pred_check_branch
      %2151 = sbr.rel (0) target = $region61
    $region60: #{generator_forward.2} parent=1 // pred_region
      _
    $region61: #{generator_forward.2} parent=1 // pred_fallthru
      _
    %2152 = vsyncpa [#allocation8], 1
    %2153 = vsyncpa [#allocation10], 1
    %2154 = vsyncpa [#allocation13], 1

</llo_original>
